<compile_context>
chip_gen: v6e
topology: v6e:2x2x1
jax: 0.10.0
libtpu: 0.0.40
codegen_flags: <defaults>
</compile_context>

<pallas_src>
import jax
import jax.numpy as jnp
from jax.experimental import pallas as pl
from jax.experimental.pallas import tpu as pltpu

LANE = 128       # lane width: last-dim tiling unit
SUB_BF16 = 16    # bf16 sublane tile (second-to-last dim)


def _round_up(x, m):
    return ((x + m - 1) // m) * m


# ----------------------------- Pallas kernel -----------------------------

def _fused_mlp_kernel(x_ref, *refs):
    """Fused MLP over one batch tile.

    refs = (w0, b0, w1, b1, ..., w4, b4, o_ref).  Weights (bf16) and biases
    (f32) are VMEM-resident for the whole grid.  Each matmul runs bf16 on the
    MXU with f32 accumulation; bias add + ReLU are done in f32, then the
    activation is cast back to bf16 to feed the next matmul.
    """
    o_ref = refs[-1]
    wb = refs[:-1]
    n_layers = len(wb) // 2

    h = x_ref[...]                                   # bf16 [tb, 128]
    for i in range(n_layers):
        w = wb[2 * i][...]                           # bf16 [Din_p, Dout_p]
        b = wb[2 * i + 1][...]                       # f32  [1, Dout_p]
        acc = jnp.dot(h, w, preferred_element_type=jnp.float32)
        h = acc + b                                  # bias add in f32
        if i != n_layers - 1:
            h = jnp.maximum(h, 0.0)                  # ReLU ('Default' act)
            h = h.astype(jnp.bfloat16)               # bf16 feed for next MXU
    o_ref[...] = h.astype(o_ref.dtype)


# ----------------------------- Wrapper -----------------------------

def fused_mlp(x2d, params, *, out_features, batch_tile=512):
    """x2d: [B, Din] f32; params: list of (w [din, dout] f32, b [1, dout] f32).

    Returns [B, out_features] f32.
    """
    B, Din = x2d.shape

    # ---- pad every feature dim to a multiple of 128 (full MXU tiles,
    #      lane-dense activations); padded cols/rows are zero so results are
    #      unchanged and sliced away at the end ----
    dims = [Din] + [w.shape[1] for (w, _) in params]
    dims_p = [_round_up(d, LANE) for d in dims]

    x_p = x2d
    if dims_p[0] != Din:
        x_p = jnp.pad(x_p, ((0, 0), (0, dims_p[0] - Din)))

    padded = []
    for li, (w, b) in enumerate(params):
        di, do = dims_p[li], dims_p[li + 1]
        if w.shape != (di, do):
            w = jnp.pad(w, ((0, di - w.shape[0]), (0, do - w.shape[1])))
        if b.shape != (1, do):
            b = jnp.pad(b, ((0, 0), (0, do - b.shape[1])))
        padded.append((w.astype(jnp.bfloat16), b.astype(jnp.float32)))

    # ---- batch (sublane) tiling: multiple of the bf16 sublane tile; ensure
    #      >= 2 grid steps when the batch is splittable so v7x's two
    #      TensorCores both get work ----
    b_ceil = _round_up(B, SUB_BF16)
    tb = min(batch_tile, b_ceil)
    if b_ceil >= 2 * SUB_BF16:
        tb = min(tb, _round_up(pl.cdiv(b_ceil, 2), SUB_BF16))
    b_pad = _round_up(b_ceil, tb)
    if b_pad != B:
        x_p = jnp.pad(x_p, ((0, b_pad - B), (0, 0)))
    x_p = x_p.astype(jnp.bfloat16)

    grid = (b_pad // tb,)
    out_p = dims_p[-1]

    flops = 2 * b_pad * sum(di * do for di, do in zip(dims_p[:-1], dims_p[1:]))
    bytes_accessed = (2 * x_p.size                                  # bf16 in
                      + sum(2 * w.size + 4 * b.size for w, b in padded)
                      + 4 * b_pad * out_p)                          # f32 out
    cost = pl.CostEstimate(flops=flops, transcendentals=0,
                           bytes_accessed=bytes_accessed)

    flat_wb = [a for pair in padded for a in pair]

    def _call(wb_pipeline_mode):
        in_specs = [pl.BlockSpec((tb, dims_p[0]), lambda i: (i, 0))]
        for (w, b) in padded:
            # Full-array blocks with a constant index_map: DMA'd once, then
            # VMEM-resident across all batch tiles.  Single-buffered (they
            # are never re-fetched), with a fallback to default buffering.
            if wb_pipeline_mode is None:
                in_specs.append(pl.BlockSpec(w.shape, lambda i: (0, 0)))
                in_specs.append(pl.BlockSpec(b.shape, lambda i: (0, 0)))
            else:
                in_specs.append(pl.BlockSpec(w.shape, lambda i: (0, 0),
                                             pipeline_mode=wb_pipeline_mode))
                in_specs.append(pl.BlockSpec(b.shape, lambda i: (0, 0),
                                             pipeline_mode=wb_pipeline_mode))
        out_spec = pl.BlockSpec((tb, out_p), lambda i: (i, 0))
        return pl.pallas_call(
            _fused_mlp_kernel,
            out_shape=jax.ShapeDtypeStruct((b_pad, out_p), jnp.float32),
            grid=grid,
            in_specs=in_specs,
            out_specs=out_spec,
            compiler_params=pltpu.CompilerParams(
                # Independent batch tiles -> shard across v7x's 2 TensorCores.
                dimension_semantics=("parallel",),
                vmem_limit_bytes=32 * 1024 * 1024),
            cost_estimate=cost,
        )(x_p, *flat_wb)

    try:
        out = _call(pl.Buffered(1))     # single-buffer the resident weights
    except Exception:                   # fallback: default double buffering
        out = _call(None)

    return out[:B, :out_features]


# ----------------------------- Parameter init -----------------------------

def init_dnn5_params(key, in_channels=64, out_channels=10,
                     features=(512, 256, 128, 64)):
    """Kaiming-normal weights (fan_in, gain=sqrt(2), as in _weights_init_mnist)
    and default nn.Linear uniform biases.  Stored as [fan_in, fan_out]
    (pre-transposed for x @ W), in f32; bf16 casting happens in the wrapper.
    """
    dims = [in_channels] + list(features) + [out_channels]
    params = []
    for i in range(len(dims) - 1):
        key, kw, kb = jax.random.split(key, 3)
        fan_in, fan_out = dims[i], dims[i + 1]
        std = (2.0 / fan_in) ** 0.5
        w = std * jax.random.normal(kw, (fan_in, fan_out), dtype=jnp.float32)
        bound = 1.0 / (fan_in ** 0.5)
        b = jax.random.uniform(kb, (1, fan_out), dtype=jnp.float32,
                               minval=-bound, maxval=bound)
        params.append((w, b))
    return params


# ----------------------------- Forward / reference -----------------------------

def dnn5_forward(x, params, out_channels):
    """DNN5.forward: flatten to [B, in_channels], run the fused Pallas MLP."""
    B = x.shape[0]
    x2 = x.reshape(B, -1)                             # x.view(x.size(0), -1)
    return fused_mlp(x2, params, out_features=out_channels)


def dnn5_reference(x, params, *, match_kernel_precision=False):
    """Pure-JAX reference.  With match_kernel_precision=True it mirrors the
    kernel's bf16-matmul / f32-accumulate arithmetic."""
    B = x.shape[0]
    h = x.reshape(B, -1)
    if match_kernel_precision:
        h = h.astype(jnp.bfloat16)
    for i, (w, b) in enumerate(params):
        if match_kernel_precision:
            w = w.astype(jnp.bfloat16)
        h = jnp.dot(h, w, preferred_element_type=jnp.float32) + b
        if i != len(params) - 1:
            h = jnp.maximum(h, 0.0)
            if match_kernel_precision:
                h = h.astype(jnp.bfloat16)
    return h


# ----------------------------- Main -----------------------------

if __name__ == "__main__":
    key = jax.random.PRNGKey(0)
    key, xkey, pkey = jax.random.split(key, 3)

    # DNN5(params): in_channels=64 (a (B,1,8,8) image flattened),
    # out_channels=10, hidden features fixed at [512, 256, 128, 64],
    # activation='Default' (ReLU).
    B = 2
    in_channels, out_channels = 64, 10
    x = jax.random.normal(xkey, (B, 1, 8, 8), dtype=jnp.float32)
    params = init_dnn5_params(pkey, in_channels, out_channels)

    out = jax.block_until_ready(dnn5_forward(x, params, out_channels))

    ref_bf16 = dnn5_reference(x, params, match_kernel_precision=True)
    ref_f32 = dnn5_reference(x, params, match_kernel_precision=False)

    assert out.shape == (B, out_channels), out.shape
    # Tight check against a reference that mirrors the kernel's precision,
    # loose check against the pure-f32 math (bf16 MXU rounding).
    assert jnp.allclose(out, ref_bf16, atol=2e-2, rtol=2e-2), "mismatch vs bf16 ref"
    assert jnp.allclose(out, ref_f32, atol=1e-1, rtol=1e-1), "mismatch vs f32 ref"

    # TODO(synk): replace_layers with a non-'Default' custom `activation`
    # class has no Pallas equivalent here; only the default ReLU path is
    # implemented.

    print("KERNEL_OK")
</pallas_src>

<mosaic_0001>
module attributes {stable_mosaic.version = 11 : i64} {
  func.func @_fused_mlp_kernel(%arg0: i32, %arg1: memref<16x128xbf16, #tpu.memory_space<vmem>>, %arg2: memref<128x512xbf16, #tpu.memory_space<vmem>>, %arg3: memref<1x512xf32, #tpu.memory_space<vmem>>, %arg4: memref<512x256xbf16, #tpu.memory_space<vmem>>, %arg5: memref<1x256xf32, #tpu.memory_space<vmem>>, %arg6: memref<256x128xbf16, #tpu.memory_space<vmem>>, %arg7: memref<1x128xf32, #tpu.memory_space<vmem>>, %arg8: memref<128x128xbf16, #tpu.memory_space<vmem>>, %arg9: memref<1x128xf32, #tpu.memory_space<vmem>>, %arg10: memref<128x128xbf16, #tpu.memory_space<vmem>>, %arg11: memref<1x128xf32, #tpu.memory_space<vmem>>, %arg12: memref<16x128xf32, #tpu.memory_space<vmem>>) attributes {dimension_semantics = [#tpu.dimension_semantics<parallel>], iteration_bounds = array<i64: 1>, scalar_prefetch = 0 : i64, scratch_operands = 0 : i64, tpu.core_type = #tpu.core_type<tc>, window_params = [{transform_indices = @transform_0, window_bounds = array<i64: 16, 128>}, {pipeline_mode = #tpu.pipeline_mode<synchronous>, transform_indices = @transform_1, window_bounds = array<i64: 128, 512>}, {pipeline_mode = #tpu.pipeline_mode<synchronous>, transform_indices = @transform_2, window_bounds = array<i64: 1, 512>}, {pipeline_mode = #tpu.pipeline_mode<synchronous>, transform_indices = @transform_3, window_bounds = array<i64: 512, 256>}, {pipeline_mode = #tpu.pipeline_mode<synchronous>, transform_indices = @transform_4, window_bounds = array<i64: 1, 256>}, {pipeline_mode = #tpu.pipeline_mode<synchronous>, transform_indices = @transform_5, window_bounds = array<i64: 256, 128>}, {pipeline_mode = #tpu.pipeline_mode<synchronous>, transform_indices = @transform_6, window_bounds = array<i64: 1, 128>}, {pipeline_mode = #tpu.pipeline_mode<synchronous>, transform_indices = @transform_7, window_bounds = array<i64: 128, 128>}, {pipeline_mode = #tpu.pipeline_mode<synchronous>, transform_indices = @transform_8, window_bounds = array<i64: 1, 128>}, {pipeline_mode = #tpu.pipeline_mode<synchronous>, transform_indices = @transform_9, window_bounds = array<i64: 128, 128>}, {pipeline_mode = #tpu.pipeline_mode<synchronous>, transform_indices = @transform_10, window_bounds = array<i64: 1, 128>}, {transform_indices = @transform_11, window_bounds = array<i64: 16, 128>}]} {
    %c0 = arith.constant 0 : index
    %c0_0 = arith.constant 0 : index
    %0 = vector.load %arg1[%c0, %c0_0] : memref<16x128xbf16, #tpu.memory_space<vmem>>, vector<16x128xbf16>
    %c0_1 = arith.constant 0 : index
    %c0_2 = arith.constant 0 : index
    %1 = vector.load %arg2[%c0_1, %c0_2] : memref<128x512xbf16, #tpu.memory_space<vmem>>, vector<128x512xbf16>
    %c0_3 = arith.constant 0 : index
    %c0_4 = arith.constant 0 : index
    %2 = vector.load %arg3[%c0_3, %c0_4] : memref<1x512xf32, #tpu.memory_space<vmem>>, vector<1x512xf32>
    %cst = arith.constant dense<0.000000e+00> : vector<16x512xf32>
    %3 = tpu.matmul %0, %1, %cst {dimension_numbers = #tpu.dot_dimension_numbers<[1], [0], [0], [1], [0, 0, 1, 1], [], []>} : vector<16x128xbf16>, vector<128x512xbf16>, vector<16x512xf32> -> vector<16x512xf32>
    %4 = vector.broadcast %2 : vector<1x512xf32> to vector<16x512xf32>
    %5 = arith.addf %3, %4 : vector<16x512xf32>
    %cst_5 = arith.constant 0.000000e+00 : f32
    %6 = vector.broadcast %cst_5 : f32 to vector<16x512xf32>
    %7 = arith.maximumf %5, %6 : vector<16x512xf32>
    %8 = arith.truncf %7 : vector<16x512xf32> to vector<16x512xbf16>
    %c0_6 = arith.constant 0 : index
    %c0_7 = arith.constant 0 : index
    %9 = vector.load %arg4[%c0_6, %c0_7] : memref<512x256xbf16, #tpu.memory_space<vmem>>, vector<512x256xbf16>
    %c0_8 = arith.constant 0 : index
    %c0_9 = arith.constant 0 : index
    %10 = vector.load %arg5[%c0_8, %c0_9] : memref<1x256xf32, #tpu.memory_space<vmem>>, vector<1x256xf32>
    %cst_10 = arith.constant dense<0.000000e+00> : vector<16x256xf32>
    %11 = tpu.matmul %8, %9, %cst_10 {dimension_numbers = #tpu.dot_dimension_numbers<[1], [0], [0], [1], [0, 0, 1, 1], [], []>} : vector<16x512xbf16>, vector<512x256xbf16>, vector<16x256xf32> -> vector<16x256xf32>
    %12 = vector.broadcast %10 : vector<1x256xf32> to vector<16x256xf32>
    %13 = arith.addf %11, %12 : vector<16x256xf32>
    %cst_11 = arith.constant 0.000000e+00 : f32
    %14 = vector.broadcast %cst_11 : f32 to vector<16x256xf32>
    %15 = arith.maximumf %13, %14 : vector<16x256xf32>
    %16 = arith.truncf %15 : vector<16x256xf32> to vector<16x256xbf16>
    %c0_12 = arith.constant 0 : index
    %c0_13 = arith.constant 0 : index
    %17 = vector.load %arg6[%c0_12, %c0_13] : memref<256x128xbf16, #tpu.memory_space<vmem>>, vector<256x128xbf16>
    %c0_14 = arith.constant 0 : index
    %c0_15 = arith.constant 0 : index
    %18 = vector.load %arg7[%c0_14, %c0_15] : memref<1x128xf32, #tpu.memory_space<vmem>>, vector<1x128xf32>
    %cst_16 = arith.constant dense<0.000000e+00> : vector<16x128xf32>
    %19 = tpu.matmul %16, %17, %cst_16 {dimension_numbers = #tpu.dot_dimension_numbers<[1], [0], [0], [1], [0, 0, 1, 1], [], []>} : vector<16x256xbf16>, vector<256x128xbf16>, vector<16x128xf32> -> vector<16x128xf32>
    %20 = vector.broadcast %18 : vector<1x128xf32> to vector<16x128xf32>
    %21 = arith.addf %19, %20 : vector<16x128xf32>
    %cst_17 = arith.constant 0.000000e+00 : f32
    %22 = vector.broadcast %cst_17 : f32 to vector<16x128xf32>
    %23 = arith.maximumf %21, %22 : vector<16x128xf32>
    %24 = arith.truncf %23 : vector<16x128xf32> to vector<16x128xbf16>
    %c0_18 = arith.constant 0 : index
    %c0_19 = arith.constant 0 : index
    %25 = vector.load %arg8[%c0_18, %c0_19] : memref<128x128xbf16, #tpu.memory_space<vmem>>, vector<128x128xbf16>
    %c0_20 = arith.constant 0 : index
    %c0_21 = arith.constant 0 : index
    %26 = vector.load %arg9[%c0_20, %c0_21] : memref<1x128xf32, #tpu.memory_space<vmem>>, vector<1x128xf32>
    %cst_22 = arith.constant dense<0.000000e+00> : vector<16x128xf32>
    %27 = tpu.matmul %24, %25, %cst_22 {dimension_numbers = #tpu.dot_dimension_numbers<[1], [0], [0], [1], [0, 0, 1, 1], [], []>} : vector<16x128xbf16>, vector<128x128xbf16>, vector<16x128xf32> -> vector<16x128xf32>
    %28 = vector.broadcast %26 : vector<1x128xf32> to vector<16x128xf32>
    %29 = arith.addf %27, %28 : vector<16x128xf32>
    %cst_23 = arith.constant 0.000000e+00 : f32
    %30 = vector.broadcast %cst_23 : f32 to vector<16x128xf32>
    %31 = arith.maximumf %29, %30 : vector<16x128xf32>
    %32 = arith.truncf %31 : vector<16x128xf32> to vector<16x128xbf16>
    %c0_24 = arith.constant 0 : index
    %c0_25 = arith.constant 0 : index
    %33 = vector.load %arg10[%c0_24, %c0_25] : memref<128x128xbf16, #tpu.memory_space<vmem>>, vector<128x128xbf16>
    %c0_26 = arith.constant 0 : index
    %c0_27 = arith.constant 0 : index
    %34 = vector.load %arg11[%c0_26, %c0_27] : memref<1x128xf32, #tpu.memory_space<vmem>>, vector<1x128xf32>
    %cst_28 = arith.constant dense<0.000000e+00> : vector<16x128xf32>
    %35 = tpu.matmul %32, %33, %cst_28 {dimension_numbers = #tpu.dot_dimension_numbers<[1], [0], [0], [1], [0, 0, 1, 1], [], []>} : vector<16x128xbf16>, vector<128x128xbf16>, vector<16x128xf32> -> vector<16x128xf32>
    %36 = vector.broadcast %34 : vector<1x128xf32> to vector<16x128xf32>
    %37 = arith.addf %35, %36 : vector<16x128xf32>
    %c0_29 = arith.constant 0 : index
    %c0_30 = arith.constant 0 : index
    %38 = vector.load %arg12[%c0_29, %c0_30] : memref<16x128xf32, #tpu.memory_space<vmem>>, vector<16x128xf32>
    tpu.vector_store %arg12[%c0_29, %c0_30], %37 {strides = array<i32>} : memref<16x128xf32, #tpu.memory_space<vmem>>, vector<16x128xf32>,
    return
  }
  func.func @transform_0(%arg0: i32) -> (i32, i32) {
    %c0_i32 = arith.constant 0 : i32
    %c0_i32_0 = arith.constant 0 : i32
    return %arg0, %c0_i32 : i32, i32
  }
  func.func @transform_1(%arg0: i32) -> (i32, i32) {
    %c0_i32 = arith.constant 0 : i32
    %c0_i32_0 = arith.constant 0 : i32
    %c0_i32_1 = arith.constant 0 : i32
    return %c0_i32, %c0_i32_0 : i32, i32
  }
  func.func @transform_2(%arg0: i32) -> (i32, i32) {
    %c0_i32 = arith.constant 0 : i32
    %c0_i32_0 = arith.constant 0 : i32
    %c0_i32_1 = arith.constant 0 : i32
    return %c0_i32, %c0_i32_0 : i32, i32
  }
  func.func @transform_3(%arg0: i32) -> (i32, i32) {
    %c0_i32 = arith.constant 0 : i32
    %c0_i32_0 = arith.constant 0 : i32
    %c0_i32_1 = arith.constant 0 : i32
    return %c0_i32, %c0_i32_0 : i32, i32
  }
  func.func @transform_4(%arg0: i32) -> (i32, i32) {
    %c0_i32 = arith.constant 0 : i32
    %c0_i32_0 = arith.constant 0 : i32
    %c0_i32_1 = arith.constant 0 : i32
    return %c0_i32, %c0_i32_0 : i32, i32
  }
  func.func @transform_5(%arg0: i32) -> (i32, i32) {
    %c0_i32 = arith.constant 0 : i32
    %c0_i32_0 = arith.constant 0 : i32
    %c0_i32_1 = arith.constant 0 : i32
    return %c0_i32, %c0_i32_0 : i32, i32
  }
  func.func @transform_6(%arg0: i32) -> (i32, i32) {
    %c0_i32 = arith.constant 0 : i32
    %c0_i32_0 = arith.constant 0 : i32
    %c0_i32_1 = arith.constant 0 : i32
    return %c0_i32, %c0_i32_0 : i32, i32
  }
  func.func @transform_7(%arg0: i32) -> (i32, i32) {
    %c0_i32 = arith.constant 0 : i32
    %c0_i32_0 = arith.constant 0 : i32
    %c0_i32_1 = arith.constant 0 : i32
    return %c0_i32, %c0_i32_0 : i32, i32
  }
  func.func @transform_8(%arg0: i32) -> (i32, i32) {
    %c0_i32 = arith.constant 0 : i32
    %c0_i32_0 = arith.constant 0 : i32
    %c0_i32_1 = arith.constant 0 : i32
    return %c0_i32, %c0_i32_0 : i32, i32
  }
  func.func @transform_9(%arg0: i32) -> (i32, i32) {
    %c0_i32 = arith.constant 0 : i32
    %c0_i32_0 = arith.constant 0 : i32
    %c0_i32_1 = arith.constant 0 : i32
    return %c0_i32, %c0_i32_0 : i32, i32
  }
  func.func @transform_10(%arg0: i32) -> (i32, i32) {
    %c0_i32 = arith.constant 0 : i32
    %c0_i32_0 = arith.constant 0 : i32
    %c0_i32_1 = arith.constant 0 : i32
    return %c0_i32, %c0_i32_0 : i32, i32
  }
  func.func @transform_11(%arg0: i32) -> (i32, i32) {
    %c0_i32 = arith.constant 0 : i32
    %c0_i32_0 = arith.constant 0 : i32
    return %arg0, %c0_i32 : i32, i32
  }
}

module attributes {stable_mosaic.version = 11 : i64} {
  func.func @_fused_mlp_kernel(%arg0: i32, %arg1: memref<16x128xbf16, #tpu.memory_space<vmem>>, %arg2: memref<128x512xbf16, #tpu.memory_space<vmem>>, %arg3: memref<1x512xf32, #tpu.memory_space<vmem>>, %arg4: memref<512x256xbf16, #tpu.memory_space<vmem>>, %arg5: memref<1x256xf32, #tpu.memory_space<vmem>>, %arg6: memref<256x128xbf16, #tpu.memory_space<vmem>>, %arg7: memref<1x128xf32, #tpu.memory_space<vmem>>, %arg8: memref<128x128xbf16, #tpu.memory_space<vmem>>, %arg9: memref<1x128xf32, #tpu.memory_space<vmem>>, %arg10: memref<128x128xbf16, #tpu.memory_space<vmem>>, %arg11: memref<1x128xf32, #tpu.memory_space<vmem>>, %arg12: memref<16x128xf32, #tpu.memory_space<vmem>>) attributes {dimension_semantics = [#tpu.dimension_semantics<parallel>], iteration_bounds = array<i64: 1>, scalar_prefetch = 0 : i64, scratch_operands = 0 : i64, tpu.core_type = #tpu.core_type<tc>, window_params = [{transform_indices = @transform_0, window_bounds = array<i64: 16, 128>}, {pipeline_mode = #tpu.pipeline_mode<synchronous>, transform_indices = @transform_1, window_bounds = array<i64: 128, 512>}, {pipeline_mode = #tpu.pipeline_mode<synchronous>, transform_indices = @transform_2, window_bounds = array<i64: 1, 512>}, {pipeline_mode = #tpu.pipeline_mode<synchronous>, transform_indices = @transform_3, window_bounds = array<i64: 512, 256>}, {pipeline_mode = #tpu.pipeline_mode<synchronous>, transform_indices = @transform_4, window_bounds = array<i64: 1, 256>}, {pipeline_mode = #tpu.pipeline_mode<synchronous>, transform_indices = @transform_5, window_bounds = array<i64: 256, 128>}, {pipeline_mode = #tpu.pipeline_mode<synchronous>, transform_indices = @transform_6, window_bounds = array<i64: 1, 128>}, {pipeline_mode = #tpu.pipeline_mode<synchronous>, transform_indices = @transform_7, window_bounds = array<i64: 128, 128>}, {pipeline_mode = #tpu.pipeline_mode<synchronous>, transform_indices = @transform_8, window_bounds = array<i64: 1, 128>}, {pipeline_mode = #tpu.pipeline_mode<synchronous>, transform_indices = @transform_9, window_bounds = array<i64: 128, 128>}, {pipeline_mode = #tpu.pipeline_mode<synchronous>, transform_indices = @transform_10, window_bounds = array<i64: 1, 128>}, {transform_indices = @transform_11, window_bounds = array<i64: 16, 128>}]} {
    %c0 = arith.constant 0 : index
    %c0_0 = arith.constant 0 : index
    %0 = vector.load %arg1[%c0, %c0_0] : memref<16x128xbf16, #tpu.memory_space<vmem>>, vector<16x128xbf16>
    %c0_1 = arith.constant 0 : index
    %c0_2 = arith.constant 0 : index
    %1 = vector.load %arg2[%c0_1, %c0_2] : memref<128x512xbf16, #tpu.memory_space<vmem>>, vector<128x512xbf16>
    %c0_3 = arith.constant 0 : index
    %c0_4 = arith.constant 0 : index
    %2 = vector.load %arg3[%c0_3, %c0_4] : memref<1x512xf32, #tpu.memory_space<vmem>>, vector<1x512xf32>
    %cst = arith.constant dense<0.000000e+00> : vector<16x512xf32>
    %3 = tpu.matmul %0, %1, %cst {dimension_numbers = #tpu.dot_dimension_numbers<[1], [0], [0], [1], [0, 0, 1, 1], [], []>} : vector<16x128xbf16>, vector<128x512xbf16>, vector<16x512xf32> -> vector<16x512xf32>
    %4 = vector.broadcast %2 : vector<1x512xf32> to vector<16x512xf32>
    %5 = arith.addf %3, %4 : vector<16x512xf32>
    %cst_5 = arith.constant 0.000000e+00 : f32
    %6 = vector.broadcast %cst_5 : f32 to vector<16x512xf32>
    %7 = arith.maximumf %5, %6 : vector<16x512xf32>
    %8 = arith.truncf %7 : vector<16x512xf32> to vector<16x512xbf16>
    %c0_6 = arith.constant 0 : index
    %c0_7 = arith.constant 0 : index
    %9 = vector.load %arg4[%c0_6, %c0_7] : memref<512x256xbf16, #tpu.memory_space<vmem>>, vector<512x256xbf16>
    %c0_8 = arith.constant 0 : index
    %c0_9 = arith.constant 0 : index
    %10 = vector.load %arg5[%c0_8, %c0_9] : memref<1x256xf32, #tpu.memory_space<vmem>>, vector<1x256xf32>
    %cst_10 = arith.constant dense<0.000000e+00> : vector<16x256xf32>
    %11 = tpu.matmul %8, %9, %cst_10 {dimension_numbers = #tpu.dot_dimension_numbers<[1], [0], [0], [1], [0, 0, 1, 1], [], []>} : vector<16x512xbf16>, vector<512x256xbf16>, vector<16x256xf32> -> vector<16x256xf32>
    %12 = vector.broadcast %10 : vector<1x256xf32> to vector<16x256xf32>
    %13 = arith.addf %11, %12 : vector<16x256xf32>
    %cst_11 = arith.constant 0.000000e+00 : f32
    %14 = vector.broadcast %cst_11 : f32 to vector<16x256xf32>
    %15 = arith.maximumf %13, %14 : vector<16x256xf32>
    %16 = arith.truncf %15 : vector<16x256xf32> to vector<16x256xbf16>
    %c0_12 = arith.constant 0 : index
    %c0_13 = arith.constant 0 : index
    %17 = vector.load %arg6[%c0_12, %c0_13] : memref<256x128xbf16, #tpu.memory_space<vmem>>, vector<256x128xbf16>
    %c0_14 = arith.constant 0 : index
    %c0_15 = arith.constant 0 : index
    %18 = vector.load %arg7[%c0_14, %c0_15] : memref<1x128xf32, #tpu.memory_space<vmem>>, vector<1x128xf32>
    %cst_16 = arith.constant dense<0.000000e+00> : vector<16x128xf32>
    %19 = tpu.matmul %16, %17, %cst_16 {dimension_numbers = #tpu.dot_dimension_numbers<[1], [0], [0], [1], [0, 0, 1, 1], [], []>} : vector<16x256xbf16>, vector<256x128xbf16>, vector<16x128xf32> -> vector<16x128xf32>
    %20 = vector.broadcast %18 : vector<1x128xf32> to vector<16x128xf32>
    %21 = arith.addf %19, %20 : vector<16x128xf32>
    %cst_17 = arith.constant 0.000000e+00 : f32
    %22 = vector.broadcast %cst_17 : f32 to vector<16x128xf32>
    %23 = arith.maximumf %21, %22 : vector<16x128xf32>
    %24 = arith.truncf %23 : vector<16x128xf32> to vector<16x128xbf16>
    %c0_18 = arith.constant 0 : index
    %c0_19 = arith.constant 0 : index
    %25 = vector.load %arg8[%c0_18, %c0_19] : memref<128x128xbf16, #tpu.memory_space<vmem>>, vector<128x128xbf16>
    %c0_20 = arith.constant 0 : index
    %c0_21 = arith.constant 0 : index
    %26 = vector.load %arg9[%c0_20, %c0_21] : memref<1x128xf32, #tpu.memory_space<vmem>>, vector<1x128xf32>
    %cst_22 = arith.constant dense<0.000000e+00> : vector<16x128xf32>
    %27 = tpu.matmul %24, %25, %cst_22 {dimension_numbers = #tpu.dot_dimension_numbers<[1], [0], [0], [1], [0, 0, 1, 1], [], []>} : vector<16x128xbf16>, vector<128x128xbf16>, vector<16x128xf32> -> vector<16x128xf32>
    %28 = vector.broadcast %26 : vector<1x128xf32> to vector<16x128xf32>
    %29 = arith.addf %27, %28 : vector<16x128xf32>
    %cst_23 = arith.constant 0.000000e+00 : f32
    %30 = vector.broadcast %cst_23 : f32 to vector<16x128xf32>
    %31 = arith.maximumf %29, %30 : vector<16x128xf32>
    %32 = arith.truncf %31 : vector<16x128xf32> to vector<16x128xbf16>
    %c0_24 = arith.constant 0 : index
    %c0_25 = arith.constant 0 : index
    %33 = vector.load %arg10[%c0_24, %c0_25] : memref<128x128xbf16, #tpu.memory_space<vmem>>, vector<128x128xbf16>
    %c0_26 = arith.constant 0 : index
    %c0_27 = arith.constant 0 : index
    %34 = vector.load %arg11[%c0_26, %c0_27] : memref<1x128xf32, #tpu.memory_space<vmem>>, vector<1x128xf32>
    %cst_28 = arith.constant dense<0.000000e+00> : vector<16x128xf32>
    %35 = tpu.matmul %32, %33, %cst_28 {dimension_numbers = #tpu.dot_dimension_numbers<[1], [0], [0], [1], [0, 0, 1, 1], [], []>} : vector<16x128xbf16>, vector<128x128xbf16>, vector<16x128xf32> -> vector<16x128xf32>
    %36 = vector.broadcast %34 : vector<1x128xf32> to vector<16x128xf32>
    %37 = arith.addf %35, %36 : vector<16x128xf32>
    %c0_29 = arith.constant 0 : index
    %c0_30 = arith.constant 0 : index
    %38 = vector.load %arg12[%c0_29, %c0_30] : memref<16x128xf32, #tpu.memory_space<vmem>>, vector<16x128xf32>
    tpu.vector_store %arg12[%c0_29, %c0_30], %37 {strides = array<i32>} : memref<16x128xf32, #tpu.memory_space<vmem>>, vector<16x128xf32>,
    return
  }
  func.func @transform_0(%arg0: i32) -> (i32, i32) {
    %c0_i32 = arith.constant 0 : i32
    %c0_i32_0 = arith.constant 0 : i32
    return %arg0, %c0_i32 : i32, i32
  }
  func.func @transform_1(%arg0: i32) -> (i32, i32) {
    %c0_i32 = arith.constant 0 : i32
    %c0_i32_0 = arith.constant 0 : i32
    %c0_i32_1 = arith.constant 0 : i32
    return %c0_i32, %c0_i32_0 : i32, i32
  }
  func.func @transform_2(%arg0: i32) -> (i32, i32) {
    %c0_i32 = arith.constant 0 : i32
    %c0_i32_0 = arith.constant 0 : i32
    %c0_i32_1 = arith.constant 0 : i32
    return %c0_i32, %c0_i32_0 : i32, i32
  }
  func.func @transform_3(%arg0: i32) -> (i32, i32) {
    %c0_i32 = arith.constant 0 : i32
    %c0_i32_0 = arith.constant 0 : i32
    %c0_i32_1 = arith.constant 0 : i32
    return %c0_i32, %c0_i32_0 : i32, i32
  }
  func.func @transform_4(%arg0: i32) -> (i32, i32) {
    %c0_i32 = arith.constant 0 : i32
    %c0_i32_0 = arith.constant 0 : i32
    %c0_i32_1 = arith.constant 0 : i32
    return %c0_i32, %c0_i32_0 : i32, i32
  }
  func.func @transform_5(%arg0: i32) -> (i32, i32) {
    %c0_i32 = arith.constant 0 : i32
    %c0_i32_0 = arith.constant 0 : i32
    %c0_i32_1 = arith.constant 0 : i32
    return %c0_i32, %c0_i32_0 : i32, i32
  }
  func.func @transform_6(%arg0: i32) -> (i32, i32) {
    %c0_i32 = arith.constant 0 : i32
    %c0_i32_0 = arith.constant 0 : i32
    %c0_i32_1 = arith.constant 0 : i32
    return %c0_i32, %c0_i32_0 : i32, i32
  }
  func.func @transform_7(%arg0: i32) -> (i32, i32) {
    %c0_i32 = arith.constant 0 : i32
    %c0_i32_0 = arith.constant 0 : i32
    %c0_i32_1 = arith.constant 0 : i32
    return %c0_i32, %c0_i32_0 : i32, i32
  }
  func.func @transform_8(%arg0: i32) -> (i32, i32) {
    %c0_i32 = arith.constant 0 : i32
    %c0_i32_0 = arith.constant 0 : i32
    %c0_i32_1 = arith.constant 0 : i32
    return %c0_i32, %c0_i32_0 : i32, i32
  }
  func.func @transform_9(%arg0: i32) -> (i32, i32) {
    %c0_i32 = arith.constant 0 : i32
    %c0_i32_0 = arith.constant 0 : i32
    %c0_i32_1 = arith.constant 0 : i32
    return %c0_i32, %c0_i32_0 : i32, i32
  }
  func.func @transform_10(%arg0: i32) -> (i32, i32) {
    %c0_i32 = arith.constant 0 : i32
    %c0_i32_0 = arith.constant 0 : i32
    %c0_i32_1 = arith.constant 0 : i32
    return %c0_i32, %c0_i32_0 : i32, i32
  }
  func.func @transform_11(%arg0: i32) -> (i32, i32) {
    %c0_i32 = arith.constant 0 : i32
    %c0_i32_0 = arith.constant 0 : i32
    return %arg0, %c0_i32 : i32, i32
  }
}

</mosaic_0001>

<llo_original>
// kernel: tpu_custom_call.1
$region0: #{tpu_custom_call.1}
  #allocation0 [shape = 'u32[]', space=smem, size = 0x4, offset = 0x4, fixed_abs, tag = 'smem constant byte address 0x4 - core index']
  #allocation1 [shape = 'u32[144,128]{1,0:T(1,128)}', space=vmem, size = 0x12000, scoped, tag = 'internal scratch']
  %s0 = inlined_call_operand.hbm [shape: bf16[16,128], index: 0, kind: input, shape index: {}]
  %s1 = inlined_call_operand.hbm [shape: bf16[128,512], index: 1, kind: input, shape index: {}]
  %s2 = inlined_call_operand.hbm [shape: f32[1,512], index: 2, kind: input, shape index: {}]
  %s3 = inlined_call_operand.hbm [shape: bf16[512,256], index: 3, kind: input, shape index: {}]
  %s4 = inlined_call_operand.vmem [shape: f32[1,256], index: 4, kind: input, shape index: {}]
  %s5 = inlined_call_operand.hbm [shape: bf16[256,128], index: 5, kind: input, shape index: {}]
  %s6 = inlined_call_operand.vmem [shape: f32[1,128], index: 6, kind: input, shape index: {}]
  %s7 = inlined_call_operand.hbm [shape: bf16[128,128], index: 7, kind: input, shape index: {}]
  %s8 = inlined_call_operand.vmem [shape: f32[1,128], index: 8, kind: input, shape index: {}]
  %s9 = inlined_call_operand.hbm [shape: bf16[128,128], index: 9, kind: input, shape index: {}]
  %s10 = inlined_call_operand.vmem [shape: f32[1,128], index: 10, kind: input, shape index: {}]
  %s11 = inlined_call_operand.hbm [shape: f32[16,128], index: 11, kind: output, shape index: {}]
  %s12 = sld [smem:[#allocation0]]
  $region82: #{tpu_custom_call.1} parent=0
    _
  %s14 = ssub.s32 1, %s12
  %s15 = scalar_select 0, %s14, %s12
  $region1: #{tpu_custom_call.1} parent=0
    #allocation2 [shape = 'u8[4096]{0}', space=vmem, size = 0x1000, scoped, tag = 'input window, operand 0, single buffered']
    #allocation3 [shape = 's32[1]{0}', space=sflag, size = 0x4, scoped, tag = 'scoped memory for tpu_custom_call.1']
    #allocation4 [shape = 's32[1]{0}', space=sflag, size = 0x4, scoped, tag = 'scoped memory for tpu_custom_call.1']
    #allocation5 [shape = 'u8[131072]{0}', space=vmem, size = 0x20000, scoped, tag = 'input window, operand 1, single buffered']
    #allocation6 [shape = 's32[1]{0}', space=sflag, size = 0x4, scoped, tag = 'scoped memory for tpu_custom_call.1']
    #allocation7 [shape = 'u8[2048]{0}', space=vmem, size = 0x800, scoped, tag = 'input window, operand 2, single buffered']
    #allocation8 [shape = 'u8[262144]{0}', space=vmem, size = 0x40000, scoped, tag = 'input window, operand 3, single buffered']
    #allocation9 [shape = 's32[1]{0}', space=sflag, size = 0x4, scoped, tag = 'scoped memory for tpu_custom_call.1']
    #allocation10 [shape = 'u8[65536]{0}', space=vmem, size = 0x10000, scoped, tag = 'input window, operand 5, single buffered']
    #allocation11 [shape = 'u8[32768]{0}', space=vmem, size = 0x8000, scoped, tag = 'input window, operand 7, single buffered']
    #allocation12 [shape = 's32[1]{0}', space=sflag, size = 0x4, scoped, tag = 'scoped memory for tpu_custom_call.1']
    #allocation13 [shape = 'u8[32768]{0}', space=vmem, size = 0x8000, scoped, tag = 'input window, operand 9, single buffered']
    #allocation14 [shape = 'u8[8192]{0}', space=vmem, size = 0x2000, scoped, tag = 'output window, operand 0, single buffered']
    %16 = vsyncpa [#allocation3], 0
    %17 = vsyncpa [#allocation6], 0
    %18 = vsyncpa [#allocation9], 0
    %19 = vsyncpa [#allocation12], 0
    %20 = vsyncpa [#allocation4], 0
    // Predicated region
    $region2: #{tpu_custom_call.1} parent=1 // pred_check
      _
    $region3: #{tpu_custom_call.1} parent=1 // pred_check_branch
      %22 = sbr.rel (0) target = $region5
    $region4: #{tpu_custom_call.1} parent=1 // pred_region
      %s24 = ssub.s32 128, 128
      %25 = vsyncadd [#allocation3], %s24
      %s26 = sshll.u32 [#allocation2], 4
      %s27 = int_to_ptr.vmem [resolvable:$true] %s26
      %32 = dma.hbm_to_vmem [thread:$0]  %s0, 128, %s27, [#allocation3], 64, 64, 4
    $region5: #{tpu_custom_call.1} parent=1 // pred_fallthru
      _
    // Predicated region
    $region6: #{tpu_custom_call.1} parent=1 // pred_check
      _
    $region7: #{tpu_custom_call.1} parent=1 // pred_check_branch
      %34 = sbr.rel (0) target = $region9
    $region8: #{tpu_custom_call.1} parent=1 // pred_region
      %s36 = ssub.s32 4096, 4096
      %37 = vsyncadd [#allocation6], %s36
      %s38 = sshll.u32 [#allocation5], 4
      %s39 = int_to_ptr.vmem [resolvable:$true] %s38
      %44 = dma.hbm_to_vmem [thread:$0]  %s1, 4096, %s39, [#allocation6], 256, 256, 16
    $region9: #{tpu_custom_call.1} parent=1 // pred_fallthru
      _
    // Predicated region
    $region10: #{tpu_custom_call.1} parent=1 // pred_check
      _
    $region11: #{tpu_custom_call.1} parent=1 // pred_check_branch
      %46 = sbr.rel (0) target = $region13
    $region12: #{tpu_custom_call.1} parent=1 // pred_region
      %s48 = ssub.s32 64, 64
      %49 = vsyncadd [#allocation6], %s48
      %s51 = sshll.u32 [#allocation7], 4
      %s52 = int_to_ptr.vmem [resolvable:$true] %s51
      %54 = dma.hbm_to_vmem [thread:$0]  %s2, 64, %s52, [#allocation6]
    $region13: #{tpu_custom_call.1} parent=1 // pred_fallthru
      _
    // Predicated region
    $region14: #{tpu_custom_call.1} parent=1 // pred_check
      _
    $region15: #{tpu_custom_call.1} parent=1 // pred_check_branch
      %56 = sbr.rel (0) target = $region17
    $region16: #{tpu_custom_call.1} parent=1 // pred_region
      %s58 = ssub.s32 8192, 8192
      %59 = vsyncadd [#allocation9], %s58
      %s60 = sshll.u32 [#allocation8], 4
      %s61 = int_to_ptr.vmem [resolvable:$true] %s60
      %66 = dma.hbm_to_vmem [thread:$0]  %s3, 8192, %s61, [#allocation9], 128, 128, 8
    $region17: #{tpu_custom_call.1} parent=1 // pred_fallthru
      _
    // Predicated region
    $region18: #{tpu_custom_call.1} parent=1 // pred_check
      _
    $region19: #{tpu_custom_call.1} parent=1 // pred_check_branch
      %68 = sbr.rel (0) target = $region21
    $region20: #{tpu_custom_call.1} parent=1 // pred_region
      _
    $region21: #{tpu_custom_call.1} parent=1 // pred_fallthru
      _
    // Predicated region
    $region22: #{tpu_custom_call.1} parent=1 // pred_check
      _
    $region23: #{tpu_custom_call.1} parent=1 // pred_check_branch
      %70 = sbr.rel (0) target = $region25
    $region24: #{tpu_custom_call.1} parent=1 // pred_region
      %s72 = ssub.s32 2048, 2048
      %73 = vsyncadd [#allocation9], %s72
      %s74 = sshll.u32 [#allocation10], 4
      %s75 = int_to_ptr.vmem [resolvable:$true] %s74
      %80 = dma.hbm_to_vmem [thread:$0]  %s5, 2048, %s75, [#allocation9], 64, 64, 4
    $region25: #{tpu_custom_call.1} parent=1 // pred_fallthru
      _
    // Predicated region
    $region26: #{tpu_custom_call.1} parent=1 // pred_check
      _
    $region27: #{tpu_custom_call.1} parent=1 // pred_check_branch
      %82 = sbr.rel (0) target = $region29
    $region28: #{tpu_custom_call.1} parent=1 // pred_region
      _
    $region29: #{tpu_custom_call.1} parent=1 // pred_fallthru
      _
    // Predicated region
    $region30: #{tpu_custom_call.1} parent=1 // pred_check
      _
    $region31: #{tpu_custom_call.1} parent=1 // pred_check_branch
      %84 = sbr.rel (0) target = $region33
    $region32: #{tpu_custom_call.1} parent=1 // pred_region
      %s86 = ssub.s32 1024, 1024
      %87 = vsyncadd [#allocation12], %s86
      %s88 = sshll.u32 [#allocation11], 4
      %s89 = int_to_ptr.vmem [resolvable:$true] %s88
      %94 = dma.hbm_to_vmem [thread:$0]  %s7, 1024, %s89, [#allocation12], 64, 64, 4
    $region33: #{tpu_custom_call.1} parent=1 // pred_fallthru
      _
    // Predicated region
    $region34: #{tpu_custom_call.1} parent=1 // pred_check
      _
    $region35: #{tpu_custom_call.1} parent=1 // pred_check_branch
      %96 = sbr.rel (0) target = $region37
    $region36: #{tpu_custom_call.1} parent=1 // pred_region
      _
    $region37: #{tpu_custom_call.1} parent=1 // pred_fallthru
      _
    // Predicated region
    $region38: #{tpu_custom_call.1} parent=1 // pred_check
      _
    $region39: #{tpu_custom_call.1} parent=1 // pred_check_branch
      %98 = sbr.rel (0) target = $region41
    $region40: #{tpu_custom_call.1} parent=1 // pred_region
      %s100 = ssub.s32 1024, 1024
      %101 = vsyncadd [#allocation12], %s100
      %s102 = sshll.u32 [#allocation13], 4
      %s103 = int_to_ptr.vmem [resolvable:$true] %s102
      %108 = dma.hbm_to_vmem [thread:$0]  %s9, 1024, %s103, [#allocation12], 64, 64, 4
    $region41: #{tpu_custom_call.1} parent=1 // pred_fallthru
      _
    // Predicated region
    $region42: #{tpu_custom_call.1} parent=1 // pred_check
      _
    $region43: #{tpu_custom_call.1} parent=1 // pred_check_branch
      %110 = sbr.rel (0) target = $region45
    $region44: #{tpu_custom_call.1} parent=1 // pred_region
      _
    $region45: #{tpu_custom_call.1} parent=1 // pred_fallthru
      _
    // Predicated region
    $region46: #{tpu_custom_call.1} parent=1 // pred_check
      _
    $region47: #{tpu_custom_call.1} parent=1 // pred_check_branch
      %112 = sbr.rel (0) target = $region49
    $region48: #{tpu_custom_call.1} parent=1 // pred_region
      %113 = dma.done [#allocation3], 128
    $region49: #{tpu_custom_call.1} parent=1 // pred_fallthru
      _
    // Predicated region
    $region50: #{tpu_custom_call.1} parent=1 // pred_check
      _
    $region51: #{tpu_custom_call.1} parent=1 // pred_check_branch
      %115 = sbr.rel (0) target = $region53
    $region52: #{tpu_custom_call.1} parent=1 // pred_region
      %116 = dma.done [#allocation6], 4096
    $region53: #{tpu_custom_call.1} parent=1 // pred_fallthru
      _
    // Predicated region
    $region54: #{tpu_custom_call.1} parent=1 // pred_check
      _
    $region55: #{tpu_custom_call.1} parent=1 // pred_check_branch
      %118 = sbr.rel (0) target = $region57
    $region56: #{tpu_custom_call.1} parent=1 // pred_region
      %119 = dma.done [#allocation6], 64
    $region57: #{tpu_custom_call.1} parent=1 // pred_fallthru
      _
    // Predicated region
    $region58: #{tpu_custom_call.1} parent=1 // pred_check
      _
    $region59: #{tpu_custom_call.1} parent=1 // pred_check_branch
      %121 = sbr.rel (0) target = $region61
    $region60: #{tpu_custom_call.1} parent=1 // pred_region
      %122 = dma.done [#allocation9], 8192
    $region61: #{tpu_custom_call.1} parent=1 // pred_fallthru
      _
    // Predicated region
    $region62: #{tpu_custom_call.1} parent=1 // pred_check
      _
    $region63: #{tpu_custom_call.1} parent=1 // pred_check_branch
      %124 = sbr.rel (0) target = $region65
    $region64: #{tpu_custom_call.1} parent=1 // pred_region
      %125 = dma.done [#allocation9], 2048
    $region65: #{tpu_custom_call.1} parent=1 // pred_fallthru
      _
    // Predicated region
    $region66: #{tpu_custom_call.1} parent=1 // pred_check
      _
    $region67: #{tpu_custom_call.1} parent=1 // pred_check_branch
      %127 = sbr.rel (0) target = $region69
    $region68: #{tpu_custom_call.1} parent=1 // pred_region
      %128 = dma.done [#allocation12], 1024
    $region69: #{tpu_custom_call.1} parent=1 // pred_fallthru
      _
    // Predicated region
    $region70: #{tpu_custom_call.1} parent=1 // pred_check
      _
    $region71: #{tpu_custom_call.1} parent=1 // pred_check_branch
      %130 = sbr.rel (0) target = $region73
    $region72: #{tpu_custom_call.1} parent=1 // pred_region
      %131 = dma.done [#allocation12], 1024
    $region73: #{tpu_custom_call.1} parent=1 // pred_fallthru
      _
    %v133 = vld [vmem:[#allocation2] sm:$0xf]
    %v134 = vld [vmem:[#allocation2 + $0x4] sm:$0xf]
    %v135 = vld [vmem:[#allocation5] sm:$0xff]
    %v136 = vld [vmem:[#allocation5 + $0x8] sm:$0xff]
    %v137 = vld [vmem:[#allocation5 + $0x10] sm:$0xff]
    %v138 = vld [vmem:[#allocation5 + $0x18] sm:$0xff]
    %v139 = vld [vmem:[#allocation5 + $0x20] sm:$0xff]
    %v140 = vld [vmem:[#allocation5 + $0x28] sm:$0xff]
    %v141 = vld [vmem:[#allocation5 + $0x30] sm:$0xff]
    %v142 = vld [vmem:[#allocation5 + $0x38] sm:$0xff]
    %v143 = vld [vmem:[#allocation5 + $0x40] sm:$0xff]
    %v144 = vld [vmem:[#allocation5 + $0x48] sm:$0xff]
    %v145 = vld [vmem:[#allocation5 + $0x50] sm:$0xff]
    %v146 = vld [vmem:[#allocation5 + $0x58] sm:$0xff]
    %v147 = vld [vmem:[#allocation5 + $0x60] sm:$0xff]
    %v148 = vld [vmem:[#allocation5 + $0x68] sm:$0xff]
    %v149 = vld [vmem:[#allocation5 + $0x70] sm:$0xff]
    %v150 = vld [vmem:[#allocation5 + $0x78] sm:$0xff]
    %v151 = vld [vmem:[#allocation5 + $0x80] sm:$0xff]
    %v152 = vld [vmem:[#allocation5 + $0x88] sm:$0xff]
    %v153 = vld [vmem:[#allocation5 + $0x90] sm:$0xff]
    %v154 = vld [vmem:[#allocation5 + $0x98] sm:$0xff]
    %v155 = vld [vmem:[#allocation5 + $0xa0] sm:$0xff]
    %v156 = vld [vmem:[#allocation5 + $0xa8] sm:$0xff]
    %v157 = vld [vmem:[#allocation5 + $0xb0] sm:$0xff]
    %v158 = vld [vmem:[#allocation5 + $0xb8] sm:$0xff]
    %v159 = vld [vmem:[#allocation5 + $0xc0] sm:$0xff]
    %v160 = vld [vmem:[#allocation5 + $0xc8] sm:$0xff]
    %v161 = vld [vmem:[#allocation5 + $0xd0] sm:$0xff]
    %v162 = vld [vmem:[#allocation5 + $0xd8] sm:$0xff]
    %v163 = vld [vmem:[#allocation5 + $0xe0] sm:$0xff]
    %v164 = vld [vmem:[#allocation5 + $0xe8] sm:$0xff]
    %v165 = vld [vmem:[#allocation5 + $0xf0] sm:$0xff]
    %v166 = vld [vmem:[#allocation5 + $0xf8] sm:$0xff]
    %v167 = vld [vmem:[#allocation7] sm:$0xf]
    %v169 = vlaneseq
    %v170 = vshrl.u32 %v169, 7
    %v171 = vsub.s32 0, %v170
    %v172 = vrot.slane %v167, %v171
    %v173 = vlaneseq
    %v174 = vshrl.u32 %v173, 7
    %v175 = vsub.s32 1, %v174
    %v176 = vrot.slane %v167, %v175
    %v177 = vlaneseq
    %v178 = vshrl.u32 %v177, 7
    %v179 = vsub.s32 2, %v178
    %v180 = vrot.slane %v167, %v179
    %v181 = vlaneseq
    %v182 = vshrl.u32 %v181, 7
    %v183 = vsub.s32 3, %v182
    %v184 = vrot.slane %v167, %v183
    %v191 = vunpack.c.l.b16 %v133
    %v192 = vunpack.c.l.b16 %v134
    %v193 = vpack.c.b16 %v192, %v191
    %v227 = vunpack.c.l.b16 %v135
    %v228 = vunpack.c.h.b16 %v135
    %v229 = vunpack.c.l.b16 %v136
    %v230 = vunpack.c.h.b16 %v136
    %v231 = vunpack.c.l.b16 %v137
    %v232 = vunpack.c.h.b16 %v137
    %v233 = vunpack.c.l.b16 %v138
    %v234 = vunpack.c.h.b16 %v138
    %v235 = vunpack.c.l.b16 %v139
    %v236 = vunpack.c.h.b16 %v139
    %v237 = vunpack.c.l.b16 %v140
    %v238 = vunpack.c.h.b16 %v140
    %v239 = vunpack.c.l.b16 %v141
    %v240 = vunpack.c.h.b16 %v141
    %v241 = vunpack.c.l.b16 %v142
    %v242 = vunpack.c.h.b16 %v142
    %v243 = vunpack.c.l.b16 %v143
    %v244 = vunpack.c.h.b16 %v143
    %v245 = vunpack.c.l.b16 %v144
    %v246 = vunpack.c.h.b16 %v144
    %v247 = vunpack.c.l.b16 %v145
    %v248 = vunpack.c.h.b16 %v145
    %v249 = vunpack.c.l.b16 %v146
    %v250 = vunpack.c.h.b16 %v146
    %v251 = vunpack.c.l.b16 %v147
    %v252 = vunpack.c.h.b16 %v147
    %v253 = vunpack.c.l.b16 %v148
    %v254 = vunpack.c.h.b16 %v148
    %v255 = vunpack.c.l.b16 %v149
    %v256 = vunpack.c.h.b16 %v149
    %v257 = vunpack.c.l.b16 %v150
    %v258 = vunpack.c.h.b16 %v150
    %v259 = vunpack.c.l.b16 %v151
    %v260 = vunpack.c.h.b16 %v151
    %v261 = vunpack.c.l.b16 %v152
    %v262 = vunpack.c.h.b16 %v152
    %v263 = vunpack.c.l.b16 %v153
    %v264 = vunpack.c.h.b16 %v153
    %v265 = vunpack.c.l.b16 %v154
    %v266 = vunpack.c.h.b16 %v154
    %v267 = vunpack.c.l.b16 %v155
    %v268 = vunpack.c.h.b16 %v155
    %v269 = vunpack.c.l.b16 %v156
    %v270 = vunpack.c.h.b16 %v156
    %v271 = vunpack.c.l.b16 %v157
    %v272 = vunpack.c.h.b16 %v157
    %v273 = vunpack.c.l.b16 %v158
    %v274 = vunpack.c.h.b16 %v158
    %v275 = vunpack.c.l.b16 %v159
    %v276 = vunpack.c.h.b16 %v159
    %v277 = vunpack.c.l.b16 %v160
    %v278 = vunpack.c.h.b16 %v160
    %v279 = vunpack.c.l.b16 %v161
    %v280 = vunpack.c.h.b16 %v161
    %v281 = vunpack.c.l.b16 %v162
    %v282 = vunpack.c.h.b16 %v162
    %v283 = vunpack.c.l.b16 %v163
    %v284 = vunpack.c.h.b16 %v163
    %v285 = vunpack.c.l.b16 %v164
    %v286 = vunpack.c.h.b16 %v164
    %v287 = vunpack.c.l.b16 %v165
    %v288 = vunpack.c.h.b16 %v165
    %v289 = vunpack.c.l.b16 %v166
    %v290 = vunpack.c.h.b16 %v166
    %v291 = vpack.c.b16 %v231, %v227
    %v292 = vpack.c.b16 %v232, %v228
    %v293 = vpack.c.b16 %v233, %v229
    %v294 = vpack.c.b16 %v234, %v230
    %v295 = vpack.c.b16 %v239, %v235
    %v296 = vpack.c.b16 %v240, %v236
    %v297 = vpack.c.b16 %v241, %v237
    %v298 = vpack.c.b16 %v242, %v238
    %v299 = vpack.c.b16 %v247, %v243
    %v300 = vpack.c.b16 %v248, %v244
    %v301 = vpack.c.b16 %v249, %v245
    %v302 = vpack.c.b16 %v250, %v246
    %v303 = vpack.c.b16 %v255, %v251
    %v304 = vpack.c.b16 %v256, %v252
    %v305 = vpack.c.b16 %v257, %v253
    %v306 = vpack.c.b16 %v258, %v254
    %v307 = vpack.c.b16 %v263, %v259
    %v308 = vpack.c.b16 %v264, %v260
    %v309 = vpack.c.b16 %v265, %v261
    %v310 = vpack.c.b16 %v266, %v262
    %v311 = vpack.c.b16 %v271, %v267
    %v312 = vpack.c.b16 %v272, %v268
    %v313 = vpack.c.b16 %v273, %v269
    %v314 = vpack.c.b16 %v274, %v270
    %v315 = vpack.c.b16 %v279, %v275
    %v316 = vpack.c.b16 %v280, %v276
    %v317 = vpack.c.b16 %v281, %v277
    %v318 = vpack.c.b16 %v282, %v278
    %v319 = vpack.c.b16 %v287, %v283
    %v320 = vpack.c.b16 %v288, %v284
    %v321 = vpack.c.b16 %v289, %v285
    %v322 = vpack.c.b16 %v290, %v286
    %355 = vmatprep.subr.bf16.mxu0 %v320
    %356 = vmatpush1.bf16.msra.mxu0 %v319
    %357 = vmatprep.subr.bf16.mxu0 %v316
    %358 = vmatpush1.bf16.msra.mxu0 %v315
    %359 = vmatprep.subr.bf16.mxu0 %v312
    %360 = vmatpush1.bf16.msra.mxu0 %v311
    %361 = vmatprep.subr.bf16.mxu0 %v308
    %362 = vmatpush1.bf16.msra.mxu0 %v307
    %363 = vmatprep.subr.bf16.mxu0 %v304
    %364 = vmatpush1.bf16.msra.mxu0 %v303
    %365 = vmatprep.subr.bf16.mxu0 %v300
    %366 = vmatpush1.bf16.msra.mxu0 %v299
    %367 = vmatprep.subr.bf16.mxu0 %v296
    %368 = vmatpush1.bf16.msra.mxu0 %v295
    %369 = vmatprep.subr.bf16.mxu0 %v292
    %370 = vmatpush1.bf16.msra.mxu0 %v291
    %371 = vmatprep.subr.bf16.mxu0 0
    %372 = vmatpush2.bf16.msra.mxu0 0
    %373 = vmatprep.subr.bf16.mxu0 0
    %374 = vmatpush2.bf16.msra.mxu0 0
    %375 = vmatprep.subr.bf16.mxu0 0
    %376 = vmatpush2.bf16.msra.mxu0 0
    %377 = vmatprep.subr.bf16.mxu0 0
    %378 = vmatpush2.bf16.msra.mxu0 0
    %379 = vmatprep.subr.bf16.mxu0 0
    %380 = vmatpush2.bf16.msra.mxu0 0
    %381 = vmatprep.subr.bf16.mxu0 0
    %382 = vmatpush2.bf16.msra.mxu0 0
    %383 = vmatprep.subr.bf16.mxu0 0
    %384 = vmatpush2.bf16.msra.mxu0 0
    %385 = vmatprep.subr.bf16.mxu0 0
    %386 = vmatpush2.bf16.msra.mxu0 0
    %387 = vmatprep.mubr.bf16.mxu0 0
    %388 = vmatmul.mubr.bf16.gmra.mxu0 %v193
    %v389 = vpop.f32.mrf.mxu0
    %v390 = vadd.f32 %v172, %v389
    %v391 = vpop.f32.mrf.mxu0
    %v392 = vadd.f32 %v176, %v391
    %v393 = vpop.f32.mrf.mxu0
    %v394 = vadd.f32 %v172, %v393
    %v395 = vpop.f32.mrf.mxu0
    %v396 = vadd.f32 %v176, %v395
    %397 = vdwg.mxu0
    %398 = vmatprep.subr.bf16.mxu0 %v322
    %399 = vmatpush1.bf16.msra.mxu0 %v321
    %400 = vmatprep.subr.bf16.mxu0 %v318
    %401 = vmatpush1.bf16.msra.mxu0 %v317
    %402 = vmatprep.subr.bf16.mxu0 %v314
    %403 = vmatpush1.bf16.msra.mxu0 %v313
    %404 = vmatprep.subr.bf16.mxu0 %v310
    %405 = vmatpush1.bf16.msra.mxu0 %v309
    %406 = vmatprep.subr.bf16.mxu0 %v306
    %407 = vmatpush1.bf16.msra.mxu0 %v305
    %408 = vmatprep.subr.bf16.mxu0 %v302
    %409 = vmatpush1.bf16.msra.mxu0 %v301
    %410 = vmatprep.subr.bf16.mxu0 %v298
    %411 = vmatpush1.bf16.msra.mxu0 %v297
    %412 = vmatprep.subr.bf16.mxu0 %v294
    %413 = vmatpush1.bf16.msra.mxu0 %v293
    %414 = vmatprep.subr.bf16.mxu0 0
    %415 = vmatpush2.bf16.msra.mxu0 0
    %416 = vmatprep.subr.bf16.mxu0 0
    %417 = vmatpush2.bf16.msra.mxu0 0
    %418 = vmatprep.subr.bf16.mxu0 0
    %419 = vmatpush2.bf16.msra.mxu0 0
    %420 = vmatprep.subr.bf16.mxu0 0
    %421 = vmatpush2.bf16.msra.mxu0 0
    %422 = vmatprep.subr.bf16.mxu0 0
    %423 = vmatpush2.bf16.msra.mxu0 0
    %424 = vmatprep.subr.bf16.mxu0 0
    %425 = vmatpush2.bf16.msra.mxu0 0
    %426 = vmatprep.subr.bf16.mxu0 0
    %427 = vmatpush2.bf16.msra.mxu0 0
    %428 = vmatprep.subr.bf16.mxu0 0
    %429 = vmatpush2.bf16.msra.mxu0 0
    %430 = vmatprep.mubr.bf16.mxu0 0
    %431 = vmatmul.mubr.bf16.gmra.mxu0 %v193
    %v432 = vpop.f32.mrf.mxu0
    %v433 = vadd.f32 %v180, %v432
    %v434 = vpop.f32.mrf.mxu0
    %v435 = vadd.f32 %v184, %v434
    %v436 = vpop.f32.mrf.mxu0
    %v437 = vadd.f32 %v180, %v436
    %v438 = vpop.f32.mrf.mxu0
    %v439 = vadd.f32 %v184, %v438
    %440 = vdwg.mxu0
    %v441 = vmax.f32 %v390, 0.0
    %v442 = vmax.f32 %v392, 0.0
    %v443 = vmax.f32 %v433, 0.0
    %v444 = vmax.f32 %v435, 0.0
    %v445 = vmax.f32 %v394, 0.0
    %v446 = vmax.f32 %v396, 0.0
    %v447 = vmax.f32 %v437, 0.0
    %v448 = vmax.f32 %v439, 0.0
    %v449 = vpack.c.bf16 %v445, %v441
    %v450 = vpack.c.bf16 %v446, %v442
    %v451 = vpack.c.bf16 %v447, %v443
    %v452 = vpack.c.bf16 %v448, %v444
    %v453 = vld [vmem:[#allocation8] sm:$0xff]
    %v454 = vld [vmem:[#allocation8 + $0x8] sm:$0xff]
    %v455 = vld [vmem:[#allocation8 + $0x10] sm:$0xff]
    %v456 = vld [vmem:[#allocation8 + $0x18] sm:$0xff]
    %v457 = vld [vmem:[#allocation8 + $0x20] sm:$0xff]
    %v458 = vld [vmem:[#allocation8 + $0x28] sm:$0xff]
    %v459 = vld [vmem:[#allocation8 + $0x30] sm:$0xff]
    %v460 = vld [vmem:[#allocation8 + $0x38] sm:$0xff]
    %v461 = vld [vmem:[#allocation8 + $0x40] sm:$0xff]
    %v462 = vld [vmem:[#allocation8 + $0x48] sm:$0xff]
    %v463 = vld [vmem:[#allocation8 + $0x50] sm:$0xff]
    %v464 = vld [vmem:[#allocation8 + $0x58] sm:$0xff]
    %v465 = vld [vmem:[#allocation8 + $0x60] sm:$0xff]
    %v466 = vld [vmem:[#allocation8 + $0x68] sm:$0xff]
    %v467 = vld [vmem:[#allocation8 + $0x70] sm:$0xff]
    %v468 = vld [vmem:[#allocation8 + $0x78] sm:$0xff]
    %v469 = vld [vmem:[#allocation8 + $0x80] sm:$0xff]
    %v470 = vld [vmem:[#allocation8 + $0x88] sm:$0xff]
    %v471 = vld [vmem:[#allocation8 + $0x90] sm:$0xff]
    %v472 = vld [vmem:[#allocation8 + $0x98] sm:$0xff]
    %v473 = vld [vmem:[#allocation8 + $0xa0] sm:$0xff]
    %v474 = vld [vmem:[#allocation8 + $0xa8] sm:$0xff]
    %v475 = vld [vmem:[#allocation8 + $0xb0] sm:$0xff]
    %v476 = vld [vmem:[#allocation8 + $0xb8] sm:$0xff]
    %v477 = vld [vmem:[#allocation8 + $0xc0] sm:$0xff]
    %v478 = vld [vmem:[#allocation8 + $0xc8] sm:$0xff]
    %v479 = vld [vmem:[#allocation8 + $0xd0] sm:$0xff]
    %v480 = vld [vmem:[#allocation8 + $0xd8] sm:$0xff]
    %v481 = vld [vmem:[#allocation8 + $0xe0] sm:$0xff]
    %v482 = vld [vmem:[#allocation8 + $0xe8] sm:$0xff]
    %v483 = vld [vmem:[#allocation8 + $0xf0] sm:$0xff]
    %v484 = vld [vmem:[#allocation8 + $0xf8] sm:$0xff]
    %v485 = vld [vmem:[#allocation8 + $0x100] sm:$0xff]
    %v486 = vld [vmem:[#allocation8 + $0x108] sm:$0xff]
    %v487 = vld [vmem:[#allocation8 + $0x110] sm:$0xff]
    %v488 = vld [vmem:[#allocation8 + $0x118] sm:$0xff]
    %v489 = vld [vmem:[#allocation8 + $0x120] sm:$0xff]
    %v490 = vld [vmem:[#allocation8 + $0x128] sm:$0xff]
    %v491 = vld [vmem:[#allocation8 + $0x130] sm:$0xff]
    %v492 = vld [vmem:[#allocation8 + $0x138] sm:$0xff]
    %v493 = vld [vmem:[#allocation8 + $0x140] sm:$0xff]
    %v494 = vld [vmem:[#allocation8 + $0x148] sm:$0xff]
    %v495 = vld [vmem:[#allocation8 + $0x150] sm:$0xff]
    %v496 = vld [vmem:[#allocation8 + $0x158] sm:$0xff]
    %v497 = vld [vmem:[#allocation8 + $0x160] sm:$0xff]
    %v498 = vld [vmem:[#allocation8 + $0x168] sm:$0xff]
    %v499 = vld [vmem:[#allocation8 + $0x170] sm:$0xff]
    %v500 = vld [vmem:[#allocation8 + $0x178] sm:$0xff]
    %v501 = vld [vmem:[#allocation8 + $0x180] sm:$0xff]
    %v502 = vld [vmem:[#allocation8 + $0x188] sm:$0xff]
    %v503 = vld [vmem:[#allocation8 + $0x190] sm:$0xff]
    %v504 = vld [vmem:[#allocation8 + $0x198] sm:$0xff]
    %v505 = vld [vmem:[#allocation8 + $0x1a0] sm:$0xff]
    %v506 = vld [vmem:[#allocation8 + $0x1a8] sm:$0xff]
    %v507 = vld [vmem:[#allocation8 + $0x1b0] sm:$0xff]
    %v508 = vld [vmem:[#allocation8 + $0x1b8] sm:$0xff]
    %v509 = vld [vmem:[#allocation8 + $0x1c0] sm:$0xff]
    %v510 = vld [vmem:[#allocation8 + $0x1c8] sm:$0xff]
    %v511 = vld [vmem:[#allocation8 + $0x1d0] sm:$0xff]
    %v512 = vld [vmem:[#allocation8 + $0x1d8] sm:$0xff]
    %v513 = vld [vmem:[#allocation8 + $0x1e0] sm:$0xff]
    %v514 = vld [vmem:[#allocation8 + $0x1e8] sm:$0xff]
    %v515 = vld [vmem:[#allocation8 + $0x1f0] sm:$0xff]
    %v516 = vld [vmem:[#allocation8 + $0x1f8] sm:$0xff]
    %v517 = vld [vmem:[%s4] sm:$0x3]
    %v519 = vlaneseq
    %v520 = vshrl.u32 %v519, 7
    %v521 = vsub.s32 0, %v520
    %v522 = vrot.slane %v517, %v521
    %v523 = vlaneseq
    %v524 = vshrl.u32 %v523, 7
    %v525 = vsub.s32 1, %v524
    %v526 = vrot.slane %v517, %v525
    %v593 = vunpack.c.l.b16 %v453
    %v594 = vunpack.c.h.b16 %v453
    %v595 = vunpack.c.l.b16 %v454
    %v596 = vunpack.c.h.b16 %v454
    %v597 = vunpack.c.l.b16 %v455
    %v598 = vunpack.c.h.b16 %v455
    %v599 = vunpack.c.l.b16 %v456
    %v600 = vunpack.c.h.b16 %v456
    %v601 = vunpack.c.l.b16 %v457
    %v602 = vunpack.c.h.b16 %v457
    %v603 = vunpack.c.l.b16 %v458
    %v604 = vunpack.c.h.b16 %v458
    %v605 = vunpack.c.l.b16 %v459
    %v606 = vunpack.c.h.b16 %v459
    %v607 = vunpack.c.l.b16 %v460
    %v608 = vunpack.c.h.b16 %v460
    %v609 = vunpack.c.l.b16 %v461
    %v610 = vunpack.c.h.b16 %v461
    %v611 = vunpack.c.l.b16 %v462
    %v612 = vunpack.c.h.b16 %v462
    %v613 = vunpack.c.l.b16 %v463
    %v614 = vunpack.c.h.b16 %v463
    %v615 = vunpack.c.l.b16 %v464
    %v616 = vunpack.c.h.b16 %v464
    %v617 = vunpack.c.l.b16 %v465
    %v618 = vunpack.c.h.b16 %v465
    %v619 = vunpack.c.l.b16 %v466
    %v620 = vunpack.c.h.b16 %v466
    %v621 = vunpack.c.l.b16 %v467
    %v622 = vunpack.c.h.b16 %v467
    %v623 = vunpack.c.l.b16 %v468
    %v624 = vunpack.c.h.b16 %v468
    %v625 = vunpack.c.l.b16 %v469
    %v626 = vunpack.c.h.b16 %v469
    %v627 = vunpack.c.l.b16 %v470
    %v628 = vunpack.c.h.b16 %v470
    %v629 = vunpack.c.l.b16 %v471
    %v630 = vunpack.c.h.b16 %v471
    %v631 = vunpack.c.l.b16 %v472
    %v632 = vunpack.c.h.b16 %v472
    %v633 = vunpack.c.l.b16 %v473
    %v634 = vunpack.c.h.b16 %v473
    %v635 = vunpack.c.l.b16 %v474
    %v636 = vunpack.c.h.b16 %v474
    %v637 = vunpack.c.l.b16 %v475
    %v638 = vunpack.c.h.b16 %v475
    %v639 = vunpack.c.l.b16 %v476
    %v640 = vunpack.c.h.b16 %v476
    %v641 = vunpack.c.l.b16 %v477
    %v642 = vunpack.c.h.b16 %v477
    %v643 = vunpack.c.l.b16 %v478
    %v644 = vunpack.c.h.b16 %v478
    %v645 = vunpack.c.l.b16 %v479
    %v646 = vunpack.c.h.b16 %v479
    %v647 = vunpack.c.l.b16 %v480
    %v648 = vunpack.c.h.b16 %v480
    %v649 = vunpack.c.l.b16 %v481
    %v650 = vunpack.c.h.b16 %v481
    %v651 = vunpack.c.l.b16 %v482
    %v652 = vunpack.c.h.b16 %v482
    %v653 = vunpack.c.l.b16 %v483
    %v654 = vunpack.c.h.b16 %v483
    %v655 = vunpack.c.l.b16 %v484
    %v656 = vunpack.c.h.b16 %v484
    %v657 = vunpack.c.l.b16 %v485
    %v658 = vunpack.c.h.b16 %v485
    %v659 = vunpack.c.l.b16 %v486
    %v660 = vunpack.c.h.b16 %v486
    %v661 = vunpack.c.l.b16 %v487
    %v662 = vunpack.c.h.b16 %v487
    %v663 = vunpack.c.l.b16 %v488
    %v664 = vunpack.c.h.b16 %v488
    %v665 = vunpack.c.l.b16 %v489
    %v666 = vunpack.c.h.b16 %v489
    %v667 = vunpack.c.l.b16 %v490
    %v668 = vunpack.c.h.b16 %v490
    %v669 = vunpack.c.l.b16 %v491
    %v670 = vunpack.c.h.b16 %v491
    %v671 = vunpack.c.l.b16 %v492
    %v672 = vunpack.c.h.b16 %v492
    %v673 = vunpack.c.l.b16 %v493
    %v674 = vunpack.c.h.b16 %v493
    %v675 = vunpack.c.l.b16 %v494
    %v676 = vunpack.c.h.b16 %v494
    %v677 = vunpack.c.l.b16 %v495
    %v678 = vunpack.c.h.b16 %v495
    %v679 = vunpack.c.l.b16 %v496
    %v680 = vunpack.c.h.b16 %v496
    %v681 = vunpack.c.l.b16 %v497
    %v682 = vunpack.c.h.b16 %v497
    %v683 = vunpack.c.l.b16 %v498
    %v684 = vunpack.c.h.b16 %v498
    %v685 = vunpack.c.l.b16 %v499
    %v686 = vunpack.c.h.b16 %v499
    %v687 = vunpack.c.l.b16 %v500
    %v688 = vunpack.c.h.b16 %v500
    %v689 = vunpack.c.l.b16 %v501
    %v690 = vunpack.c.h.b16 %v501
    %v691 = vunpack.c.l.b16 %v502
    %v692 = vunpack.c.h.b16 %v502
    %v693 = vunpack.c.l.b16 %v503
    %v694 = vunpack.c.h.b16 %v503
    %v695 = vunpack.c.l.b16 %v504
    %v696 = vunpack.c.h.b16 %v504
    %v697 = vunpack.c.l.b16 %v505
    %v698 = vunpack.c.h.b16 %v505
    %v699 = vunpack.c.l.b16 %v506
    %v700 = vunpack.c.h.b16 %v506
    %v701 = vunpack.c.l.b16 %v507
    %v702 = vunpack.c.h.b16 %v507
    %v703 = vunpack.c.l.b16 %v508
    %v704 = vunpack.c.h.b16 %v508
    %v705 = vunpack.c.l.b16 %v509
    %v706 = vunpack.c.h.b16 %v509
    %v707 = vunpack.c.l.b16 %v510
    %v708 = vunpack.c.h.b16 %v510
    %v709 = vunpack.c.l.b16 %v511
    %v710 = vunpack.c.h.b16 %v511
    %v711 = vunpack.c.l.b16 %v512
    %v712 = vunpack.c.h.b16 %v512
    %v713 = vunpack.c.l.b16 %v513
    %v714 = vunpack.c.h.b16 %v513
    %v715 = vunpack.c.l.b16 %v514
    %v716 = vunpack.c.h.b16 %v514
    %v717 = vunpack.c.l.b16 %v515
    %v718 = vunpack.c.h.b16 %v515
    %v719 = vunpack.c.l.b16 %v516
    %v720 = vunpack.c.h.b16 %v516
    %v721 = vpack.c.b16 %v595, %v593
    %v722 = vpack.c.b16 %v596, %v594
    %v723 = vpack.c.b16 %v599, %v597
    %v724 = vpack.c.b16 %v600, %v598
    %v725 = vpack.c.b16 %v603, %v601
    %v726 = vpack.c.b16 %v604, %v602
    %v727 = vpack.c.b16 %v607, %v605
    %v728 = vpack.c.b16 %v608, %v606
    %v729 = vpack.c.b16 %v611, %v609
    %v730 = vpack.c.b16 %v612, %v610
    %v731 = vpack.c.b16 %v615, %v613
    %v732 = vpack.c.b16 %v616, %v614
    %v733 = vpack.c.b16 %v619, %v617
    %v734 = vpack.c.b16 %v620, %v618
    %v735 = vpack.c.b16 %v623, %v621
    %v736 = vpack.c.b16 %v624, %v622
    %v737 = vpack.c.b16 %v627, %v625
    %v738 = vpack.c.b16 %v628, %v626
    %v739 = vpack.c.b16 %v631, %v629
    %v740 = vpack.c.b16 %v632, %v630
    %v741 = vpack.c.b16 %v635, %v633
    %v742 = vpack.c.b16 %v636, %v634
    %v743 = vpack.c.b16 %v639, %v637
    %v744 = vpack.c.b16 %v640, %v638
    %v745 = vpack.c.b16 %v643, %v641
    %v746 = vpack.c.b16 %v644, %v642
    %v747 = vpack.c.b16 %v647, %v645
    %v748 = vpack.c.b16 %v648, %v646
    %v749 = vpack.c.b16 %v651, %v649
    %v750 = vpack.c.b16 %v652, %v650
    %v751 = vpack.c.b16 %v655, %v653
    %v752 = vpack.c.b16 %v656, %v654
    %v753 = vpack.c.b16 %v659, %v657
    %v754 = vpack.c.b16 %v660, %v658
    %v755 = vpack.c.b16 %v663, %v661
    %v756 = vpack.c.b16 %v664, %v662
    %v757 = vpack.c.b16 %v667, %v665
    %v758 = vpack.c.b16 %v668, %v666
    %v759 = vpack.c.b16 %v671, %v669
    %v760 = vpack.c.b16 %v672, %v670
    %v761 = vpack.c.b16 %v675, %v673
    %v762 = vpack.c.b16 %v676, %v674
    %v763 = vpack.c.b16 %v679, %v677
    %v764 = vpack.c.b16 %v680, %v678
    %v765 = vpack.c.b16 %v683, %v681
    %v766 = vpack.c.b16 %v684, %v682
    %v767 = vpack.c.b16 %v687, %v685
    %v768 = vpack.c.b16 %v688, %v686
    %v769 = vpack.c.b16 %v691, %v689
    %v770 = vpack.c.b16 %v692, %v690
    %v771 = vpack.c.b16 %v695, %v693
    %v772 = vpack.c.b16 %v696, %v694
    %v773 = vpack.c.b16 %v699, %v697
    %v774 = vpack.c.b16 %v700, %v698
    %v775 = vpack.c.b16 %v703, %v701
    %v776 = vpack.c.b16 %v704, %v702
    %v777 = vpack.c.b16 %v707, %v705
    %v778 = vpack.c.b16 %v708, %v706
    %v779 = vpack.c.b16 %v711, %v709
    %v780 = vpack.c.b16 %v712, %v710
    %v781 = vpack.c.b16 %v715, %v713
    %v782 = vpack.c.b16 %v716, %v714
    %v783 = vpack.c.b16 %v719, %v717
    %v784 = vpack.c.b16 %v720, %v718
    %849 = vmatprep.subr.bf16.mxu0 %v736
    %850 = vmatpush1.bf16.msra.mxu0 %v735
    %851 = vmatprep.subr.bf16.mxu0 %v734
    %852 = vmatpush1.bf16.msra.mxu0 %v733
    %853 = vmatprep.subr.bf16.mxu0 %v732
    %854 = vmatpush1.bf16.msra.mxu0 %v731
    %855 = vmatprep.subr.bf16.mxu0 %v730
    %856 = vmatpush1.bf16.msra.mxu0 %v729
    %857 = vmatprep.subr.bf16.mxu0 %v728
    %858 = vmatpush1.bf16.msra.mxu0 %v727
    %859 = vmatprep.subr.bf16.mxu0 %v726
    %860 = vmatpush1.bf16.msra.mxu0 %v725
    %861 = vmatprep.subr.bf16.mxu0 %v724
    %862 = vmatpush1.bf16.msra.mxu0 %v723
    %863 = vmatprep.subr.bf16.mxu0 %v722
    %864 = vmatpush1.bf16.msra.mxu0 %v721
    %865 = vmatprep.subr.bf16.mxu0 %v752
    %866 = vmatpush2.bf16.msra.mxu0 %v751
    %867 = vmatprep.subr.bf16.mxu0 %v750
    %868 = vmatpush2.bf16.msra.mxu0 %v749
    %869 = vmatprep.subr.bf16.mxu0 %v748
    %870 = vmatpush2.bf16.msra.mxu0 %v747
    %871 = vmatprep.subr.bf16.mxu0 %v746
    %872 = vmatpush2.bf16.msra.mxu0 %v745
    %873 = vmatprep.subr.bf16.mxu0 %v744
    %874 = vmatpush2.bf16.msra.mxu0 %v743
    %875 = vmatprep.subr.bf16.mxu0 %v742
    %876 = vmatpush2.bf16.msra.mxu0 %v741
    %877 = vmatprep.subr.bf16.mxu0 %v740
    %878 = vmatpush2.bf16.msra.mxu0 %v739
    %879 = vmatprep.subr.bf16.mxu0 %v738
    %880 = vmatpush2.bf16.msra.mxu0 %v737
    %881 = vmatprep.mubr.bf16.mxu0 %v450
    %882 = vmatmul.mubr.bf16.gmra.mxu0 %v449
    %v883 = vpop.f32.mrf.mxu0
    %v884 = vadd.f32 %v522, %v883
    %v885 = vpop.f32.mrf.mxu0
    %v886 = vadd.f32 %v526, %v885
    %v887 = vpop.f32.mrf.mxu0
    %v888 = vadd.f32 %v522, %v887
    %v889 = vpop.f32.mrf.mxu0
    %v890 = vadd.f32 %v526, %v889
    %891 = vdwg.mxu0
    %892 = vmatprep.subr.bf16.mxu0 %v768
    %893 = vmatpush1.bf16.msra.mxu0 %v767
    %894 = vmatprep.subr.bf16.mxu0 %v766
    %895 = vmatpush1.bf16.msra.mxu0 %v765
    %896 = vmatprep.subr.bf16.mxu0 %v764
    %897 = vmatpush1.bf16.msra.mxu0 %v763
    %898 = vmatprep.subr.bf16.mxu0 %v762
    %899 = vmatpush1.bf16.msra.mxu0 %v761
    %900 = vmatprep.subr.bf16.mxu0 %v760
    %901 = vmatpush1.bf16.msra.mxu0 %v759
    %902 = vmatprep.subr.bf16.mxu0 %v758
    %903 = vmatpush1.bf16.msra.mxu0 %v757
    %904 = vmatprep.subr.bf16.mxu0 %v756
    %905 = vmatpush1.bf16.msra.mxu0 %v755
    %906 = vmatprep.subr.bf16.mxu0 %v754
    %907 = vmatpush1.bf16.msra.mxu0 %v753
    %908 = vmatprep.subr.bf16.mxu0 %v784
    %909 = vmatpush2.bf16.msra.mxu0 %v783
    %910 = vmatprep.subr.bf16.mxu0 %v782
    %911 = vmatpush2.bf16.msra.mxu0 %v781
    %912 = vmatprep.subr.bf16.mxu0 %v780
    %913 = vmatpush2.bf16.msra.mxu0 %v779
    %914 = vmatprep.subr.bf16.mxu0 %v778
    %915 = vmatpush2.bf16.msra.mxu0 %v777
    %916 = vmatprep.subr.bf16.mxu0 %v776
    %917 = vmatpush2.bf16.msra.mxu0 %v775
    %918 = vmatprep.subr.bf16.mxu0 %v774
    %919 = vmatpush2.bf16.msra.mxu0 %v773
    %920 = vmatprep.subr.bf16.mxu0 %v772
    %921 = vmatpush2.bf16.msra.mxu0 %v771
    %922 = vmatprep.subr.bf16.mxu0 %v770
    %923 = vmatpush2.bf16.msra.mxu0 %v769
    %924 = vmatprep.mubr.bf16.mxu0 %v452
    %925 = vmatmul.mubr.bf16.gmra.mxu0 %v451
    %v926 = vpop.f32.mrf.mxu0
    %v927 = vadd.f32 %v884, %v926
    %v928 = vpop.f32.mrf.mxu0
    %v929 = vadd.f32 %v886, %v928
    %v930 = vpop.f32.mrf.mxu0
    %v931 = vadd.f32 %v888, %v930
    %v932 = vpop.f32.mrf.mxu0
    %v933 = vadd.f32 %v890, %v932
    %934 = vdwg.mxu0
    %v935 = vmax.f32 %v927, 0.0
    %v936 = vmax.f32 %v929, 0.0
    %v937 = vmax.f32 %v931, 0.0
    %v938 = vmax.f32 %v933, 0.0
    %v939 = vpack.c.bf16 %v937, %v935
    %v940 = vpack.c.bf16 %v938, %v936
    %v941 = vld [vmem:[#allocation10] sm:$0xf]
    %v942 = vld [vmem:[#allocation10 + $0x4] sm:$0xf]
    %v943 = vld [vmem:[#allocation10 + $0x8] sm:$0xf]
    %v944 = vld [vmem:[#allocation10 + $0xc] sm:$0xf]
    %v945 = vld [vmem:[#allocation10 + $0x10] sm:$0xf]
    %v946 = vld [vmem:[#allocation10 + $0x14] sm:$0xf]
    %v947 = vld [vmem:[#allocation10 + $0x18] sm:$0xf]
    %v948 = vld [vmem:[#allocation10 + $0x1c] sm:$0xf]
    %v949 = vld [vmem:[#allocation10 + $0x20] sm:$0xf]
    %v950 = vld [vmem:[#allocation10 + $0x24] sm:$0xf]
    %v951 = vld [vmem:[#allocation10 + $0x28] sm:$0xf]
    %v952 = vld [vmem:[#allocation10 + $0x2c] sm:$0xf]
    %v953 = vld [vmem:[#allocation10 + $0x30] sm:$0xf]
    %v954 = vld [vmem:[#allocation10 + $0x34] sm:$0xf]
    %v955 = vld [vmem:[#allocation10 + $0x38] sm:$0xf]
    %v956 = vld [vmem:[#allocation10 + $0x3c] sm:$0xf]
    %v957 = vld [vmem:[#allocation10 + $0x40] sm:$0xf]
    %v958 = vld [vmem:[#allocation10 + $0x44] sm:$0xf]
    %v959 = vld [vmem:[#allocation10 + $0x48] sm:$0xf]
    %v960 = vld [vmem:[#allocation10 + $0x4c] sm:$0xf]
    %v961 = vld [vmem:[#allocation10 + $0x50] sm:$0xf]
    %v962 = vld [vmem:[#allocation10 + $0x54] sm:$0xf]
    %v963 = vld [vmem:[#allocation10 + $0x58] sm:$0xf]
    %v964 = vld [vmem:[#allocation10 + $0x5c] sm:$0xf]
    %v965 = vld [vmem:[#allocation10 + $0x60] sm:$0xf]
    %v966 = vld [vmem:[#allocation10 + $0x64] sm:$0xf]
    %v967 = vld [vmem:[#allocation10 + $0x68] sm:$0xf]
    %v968 = vld [vmem:[#allocation10 + $0x6c] sm:$0xf]
    %v969 = vld [vmem:[#allocation10 + $0x70] sm:$0xf]
    %v970 = vld [vmem:[#allocation10 + $0x74] sm:$0xf]
    %v971 = vld [vmem:[#allocation10 + $0x78] sm:$0xf]
    %v972 = vld [vmem:[#allocation10 + $0x7c] sm:$0xf]
    %v973 = vld [vmem:[%s6] sm:$0x1]
    %v975 = vlaneseq
    %v976 = vshrl.u32 %v975, 7
    %v977 = vsub.s32 0, %v976
    %v978 = vrot.slane %v973, %v977
    %v1012 = vunpack.c.l.b16 %v941
    %v1013 = vunpack.c.l.b16 %v942
    %v1014 = vunpack.c.l.b16 %v943
    %v1015 = vunpack.c.l.b16 %v944
    %v1016 = vunpack.c.l.b16 %v945
    %v1017 = vunpack.c.l.b16 %v946
    %v1018 = vunpack.c.l.b16 %v947
    %v1019 = vunpack.c.l.b16 %v948
    %v1020 = vunpack.c.l.b16 %v949
    %v1021 = vunpack.c.l.b16 %v950
    %v1022 = vunpack.c.l.b16 %v951
    %v1023 = vunpack.c.l.b16 %v952
    %v1024 = vunpack.c.l.b16 %v953
    %v1025 = vunpack.c.l.b16 %v954
    %v1026 = vunpack.c.l.b16 %v955
    %v1027 = vunpack.c.l.b16 %v956
    %v1028 = vunpack.c.l.b16 %v957
    %v1029 = vunpack.c.l.b16 %v958
    %v1030 = vunpack.c.l.b16 %v959
    %v1031 = vunpack.c.l.b16 %v960
    %v1032 = vunpack.c.l.b16 %v961
    %v1033 = vunpack.c.l.b16 %v962
    %v1034 = vunpack.c.l.b16 %v963
    %v1035 = vunpack.c.l.b16 %v964
    %v1036 = vunpack.c.l.b16 %v965
    %v1037 = vunpack.c.l.b16 %v966
    %v1038 = vunpack.c.l.b16 %v967
    %v1039 = vunpack.c.l.b16 %v968
    %v1040 = vunpack.c.l.b16 %v969
    %v1041 = vunpack.c.l.b16 %v970
    %v1042 = vunpack.c.l.b16 %v971
    %v1043 = vunpack.c.l.b16 %v972
    %v1044 = vpack.c.b16 %v1013, %v1012
    %v1045 = vpack.c.b16 %v1015, %v1014
    %v1046 = vpack.c.b16 %v1017, %v1016
    %v1047 = vpack.c.b16 %v1019, %v1018
    %v1048 = vpack.c.b16 %v1021, %v1020
    %v1049 = vpack.c.b16 %v1023, %v1022
    %v1050 = vpack.c.b16 %v1025, %v1024
    %v1051 = vpack.c.b16 %v1027, %v1026
    %v1052 = vpack.c.b16 %v1029, %v1028
    %v1053 = vpack.c.b16 %v1031, %v1030
    %v1054 = vpack.c.b16 %v1033, %v1032
    %v1055 = vpack.c.b16 %v1035, %v1034
    %v1056 = vpack.c.b16 %v1037, %v1036
    %v1057 = vpack.c.b16 %v1039, %v1038
    %v1058 = vpack.c.b16 %v1041, %v1040
    %v1059 = vpack.c.b16 %v1043, %v1042
    %1076 = vmatprep.subr.bf16.mxu0 0
    %1077 = vmatpush1.bf16.msra.mxu0 %v1051
    %1078 = vmatprep.subr.bf16.mxu0 0
    %1079 = vmatpush1.bf16.msra.mxu0 %v1050
    %1080 = vmatprep.subr.bf16.mxu0 0
    %1081 = vmatpush1.bf16.msra.mxu0 %v1049
    %1082 = vmatprep.subr.bf16.mxu0 0
    %1083 = vmatpush1.bf16.msra.mxu0 %v1048
    %1084 = vmatprep.subr.bf16.mxu0 0
    %1085 = vmatpush1.bf16.msra.mxu0 %v1047
    %1086 = vmatprep.subr.bf16.mxu0 0
    %1087 = vmatpush1.bf16.msra.mxu0 %v1046
    %1088 = vmatprep.subr.bf16.mxu0 0
    %1089 = vmatpush1.bf16.msra.mxu0 %v1045
    %1090 = vmatprep.subr.bf16.mxu0 0
    %1091 = vmatpush1.bf16.msra.mxu0 %v1044
    %1092 = vmatprep.subr.bf16.mxu0 0
    %1093 = vmatpush2.bf16.msra.mxu0 %v1059
    %1094 = vmatprep.subr.bf16.mxu0 0
    %1095 = vmatpush2.bf16.msra.mxu0 %v1058
    %1096 = vmatprep.subr.bf16.mxu0 0
    %1097 = vmatpush2.bf16.msra.mxu0 %v1057
    %1098 = vmatprep.subr.bf16.mxu0 0
    %1099 = vmatpush2.bf16.msra.mxu0 %v1056
    %1100 = vmatprep.subr.bf16.mxu0 0
    %1101 = vmatpush2.bf16.msra.mxu0 %v1055
    %1102 = vmatprep.subr.bf16.mxu0 0
    %1103 = vmatpush2.bf16.msra.mxu0 %v1054
    %1104 = vmatprep.subr.bf16.mxu0 0
    %1105 = vmatpush2.bf16.msra.mxu0 %v1053
    %1106 = vmatprep.subr.bf16.mxu0 0
    %1107 = vmatpush2.bf16.msra.mxu0 %v1052
    %1108 = vmatprep.mubr.bf16.mxu0 %v940
    %1109 = vmatmul.mubr.bf16.gmra.mxu0 %v939
    %v1110 = vpop.f32.mrf.mxu0
    %v1111 = vadd.f32 %v978, %v1110
    %v1112 = vpop.f32.mrf.mxu0
    %v1113 = vpop.f32.mrf.mxu0
    %v1114 = vadd.f32 %v978, %v1113
    %v1115 = vpop.f32.mrf.mxu0
    %1116 = vdwg.mxu0
    %v1117 = vmax.f32 %v1111, 0.0
    %v1118 = vmax.f32 %v1114, 0.0
    %v1119 = vpack.c.bf16 %v1118, %v1117
    %v1120 = vld [vmem:[#allocation11] sm:$0xf]
    %v1121 = vld [vmem:[#allocation11 + $0x4] sm:$0xf]
    %v1122 = vld [vmem:[#allocation11 + $0x8] sm:$0xf]
    %v1123 = vld [vmem:[#allocation11 + $0xc] sm:$0xf]
    %v1124 = vld [vmem:[#allocation11 + $0x10] sm:$0xf]
    %v1125 = vld [vmem:[#allocation11 + $0x14] sm:$0xf]
    %v1126 = vld [vmem:[#allocation11 + $0x18] sm:$0xf]
    %v1127 = vld [vmem:[#allocation11 + $0x1c] sm:$0xf]
    %v1128 = vld [vmem:[#allocation11 + $0x20] sm:$0xf]
    %v1129 = vld [vmem:[#allocation11 + $0x24] sm:$0xf]
    %v1130 = vld [vmem:[#allocation11 + $0x28] sm:$0xf]
    %v1131 = vld [vmem:[#allocation11 + $0x2c] sm:$0xf]
    %v1132 = vld [vmem:[#allocation11 + $0x30] sm:$0xf]
    %v1133 = vld [vmem:[#allocation11 + $0x34] sm:$0xf]
    %v1134 = vld [vmem:[#allocation11 + $0x38] sm:$0xf]
    %v1135 = vld [vmem:[#allocation11 + $0x3c] sm:$0xf]
    %v1136 = vld [vmem:[%s8] sm:$0x1]
    %v1138 = vlaneseq
    %v1139 = vshrl.u32 %v1138, 7
    %v1140 = vsub.s32 0, %v1139
    %v1141 = vrot.slane %v1136, %v1140
    %v1159 = vunpack.c.l.b16 %v1120
    %v1160 = vunpack.c.l.b16 %v1121
    %v1161 = vunpack.c.l.b16 %v1122
    %v1162 = vunpack.c.l.b16 %v1123
    %v1163 = vunpack.c.l.b16 %v1124
    %v1164 = vunpack.c.l.b16 %v1125
    %v1165 = vunpack.c.l.b16 %v1126
    %v1166 = vunpack.c.l.b16 %v1127
    %v1167 = vunpack.c.l.b16 %v1128
    %v1168 = vunpack.c.l.b16 %v1129
    %v1169 = vunpack.c.l.b16 %v1130
    %v1170 = vunpack.c.l.b16 %v1131
    %v1171 = vunpack.c.l.b16 %v1132
    %v1172 = vunpack.c.l.b16 %v1133
    %v1173 = vunpack.c.l.b16 %v1134
    %v1174 = vunpack.c.l.b16 %v1135
    %v1175 = vpack.c.b16 %v1160, %v1159
    %v1176 = vpack.c.b16 %v1162, %v1161
    %v1177 = vpack.c.b16 %v1164, %v1163
    %v1178 = vpack.c.b16 %v1166, %v1165
    %v1179 = vpack.c.b16 %v1168, %v1167
    %v1180 = vpack.c.b16 %v1170, %v1169
    %v1181 = vpack.c.b16 %v1172, %v1171
    %v1182 = vpack.c.b16 %v1174, %v1173
    %1191 = vmatprep.subr.bf16.mxu0 0
    %1192 = vmatpush1.bf16.msra.mxu0 %v1182
    %1193 = vmatprep.subr.bf16.mxu0 0
    %1194 = vmatpush1.bf16.msra.mxu0 %v1181
    %1195 = vmatprep.subr.bf16.mxu0 0
    %1196 = vmatpush1.bf16.msra.mxu0 %v1180
    %1197 = vmatprep.subr.bf16.mxu0 0
    %1198 = vmatpush1.bf16.msra.mxu0 %v1179
    %1199 = vmatprep.subr.bf16.mxu0 0
    %1200 = vmatpush1.bf16.msra.mxu0 %v1178
    %1201 = vmatprep.subr.bf16.mxu0 0
    %1202 = vmatpush1.bf16.msra.mxu0 %v1177
    %1203 = vmatprep.subr.bf16.mxu0 0
    %1204 = vmatpush1.bf16.msra.mxu0 %v1176
    %1205 = vmatprep.subr.bf16.mxu0 0
    %1206 = vmatpush1.bf16.msra.mxu0 %v1175
    %1207 = vmatprep.subr.bf16.mxu0 0
    %1208 = vmatpush2.bf16.msra.mxu0 0
    %1209 = vmatprep.subr.bf16.mxu0 0
    %1210 = vmatpush2.bf16.msra.mxu0 0
    %1211 = vmatprep.subr.bf16.mxu0 0
    %1212 = vmatpush2.bf16.msra.mxu0 0
    %1213 = vmatprep.subr.bf16.mxu0 0
    %1214 = vmatpush2.bf16.msra.mxu0 0
    %1215 = vmatprep.subr.bf16.mxu0 0
    %1216 = vmatpush2.bf16.msra.mxu0 0
    %1217 = vmatprep.subr.bf16.mxu0 0
    %1218 = vmatpush2.bf16.msra.mxu0 0
    %1219 = vmatprep.subr.bf16.mxu0 0
    %1220 = vmatpush2.bf16.msra.mxu0 0
    %1221 = vmatprep.subr.bf16.mxu0 0
    %1222 = vmatpush2.bf16.msra.mxu0 0
    %1223 = vmatprep.mubr.bf16.mxu0 0
    %1224 = vmatmul.mubr.bf16.gmra.mxu0 %v1119
    %v1225 = vpop.f32.mrf.mxu0
    %v1226 = vadd.f32 %v1141, %v1225
    %v1227 = vpop.f32.mrf.mxu0
    %v1228 = vpop.f32.mrf.mxu0
    %v1229 = vadd.f32 %v1141, %v1228
    %v1230 = vpop.f32.mrf.mxu0
    %1231 = vdwg.mxu0
    %v1232 = vmax.f32 %v1226, 0.0
    %v1233 = vmax.f32 %v1229, 0.0
    %v1234 = vpack.c.bf16 %v1233, %v1232
    %v1235 = vld [vmem:[#allocation13] sm:$0xf]
    %v1236 = vld [vmem:[#allocation13 + $0x4] sm:$0xf]
    %v1237 = vld [vmem:[#allocation13 + $0x8] sm:$0xf]
    %v1238 = vld [vmem:[#allocation13 + $0xc] sm:$0xf]
    %v1239 = vld [vmem:[#allocation13 + $0x10] sm:$0xf]
    %v1240 = vld [vmem:[#allocation13 + $0x14] sm:$0xf]
    %v1241 = vld [vmem:[#allocation13 + $0x18] sm:$0xf]
    %v1242 = vld [vmem:[#allocation13 + $0x1c] sm:$0xf]
    %v1243 = vld [vmem:[#allocation13 + $0x20] sm:$0xf]
    %v1244 = vld [vmem:[#allocation13 + $0x24] sm:$0xf]
    %v1245 = vld [vmem:[#allocation13 + $0x28] sm:$0xf]
    %v1246 = vld [vmem:[#allocation13 + $0x2c] sm:$0xf]
    %v1247 = vld [vmem:[#allocation13 + $0x30] sm:$0xf]
    %v1248 = vld [vmem:[#allocation13 + $0x34] sm:$0xf]
    %v1249 = vld [vmem:[#allocation13 + $0x38] sm:$0xf]
    %v1250 = vld [vmem:[#allocation13 + $0x3c] sm:$0xf]
    %v1251 = vld [vmem:[%s10] sm:$0x1]
    %v1253 = vlaneseq
    %v1254 = vshrl.u32 %v1253, 7
    %v1255 = vsub.s32 0, %v1254
    %v1256 = vrot.slane %v1251, %v1255
    %v1274 = vunpack.c.l.b16 %v1235
    %v1275 = vunpack.c.l.b16 %v1236
    %v1276 = vunpack.c.l.b16 %v1237
    %v1277 = vunpack.c.l.b16 %v1238
    %v1278 = vunpack.c.l.b16 %v1239
    %v1279 = vunpack.c.l.b16 %v1240
    %v1280 = vunpack.c.l.b16 %v1241
    %v1281 = vunpack.c.l.b16 %v1242
    %v1282 = vunpack.c.l.b16 %v1243
    %v1283 = vunpack.c.l.b16 %v1244
    %v1284 = vunpack.c.l.b16 %v1245
    %v1285 = vunpack.c.l.b16 %v1246
    %v1286 = vunpack.c.l.b16 %v1247
    %v1287 = vunpack.c.l.b16 %v1248
    %v1288 = vunpack.c.l.b16 %v1249
    %v1289 = vunpack.c.l.b16 %v1250
    %v1290 = vpack.c.b16 %v1275, %v1274
    %v1291 = vpack.c.b16 %v1277, %v1276
    %v1292 = vpack.c.b16 %v1279, %v1278
    %v1293 = vpack.c.b16 %v1281, %v1280
    %v1294 = vpack.c.b16 %v1283, %v1282
    %v1295 = vpack.c.b16 %v1285, %v1284
    %v1296 = vpack.c.b16 %v1287, %v1286
    %v1297 = vpack.c.b16 %v1289, %v1288
    %1306 = vmatprep.subr.bf16.mxu0 0
    %1307 = vmatpush1.bf16.msra.mxu0 %v1297
    %1308 = vmatprep.subr.bf16.mxu0 0
    %1309 = vmatpush1.bf16.msra.mxu0 %v1296
    %1310 = vmatprep.subr.bf16.mxu0 0
    %1311 = vmatpush1.bf16.msra.mxu0 %v1295
    %1312 = vmatprep.subr.bf16.mxu0 0
    %1313 = vmatpush1.bf16.msra.mxu0 %v1294
    %1314 = vmatprep.subr.bf16.mxu0 0
    %1315 = vmatpush1.bf16.msra.mxu0 %v1293
    %1316 = vmatprep.subr.bf16.mxu0 0
    %1317 = vmatpush1.bf16.msra.mxu0 %v1292
    %1318 = vmatprep.subr.bf16.mxu0 0
    %1319 = vmatpush1.bf16.msra.mxu0 %v1291
    %1320 = vmatprep.subr.bf16.mxu0 0
    %1321 = vmatpush1.bf16.msra.mxu0 %v1290
    %1322 = vmatprep.subr.bf16.mxu0 0
    %1323 = vmatpush2.bf16.msra.mxu0 0
    %1324 = vmatprep.subr.bf16.mxu0 0
    %1325 = vmatpush2.bf16.msra.mxu0 0
    %1326 = vmatprep.subr.bf16.mxu0 0
    %1327 = vmatpush2.bf16.msra.mxu0 0
    %1328 = vmatprep.subr.bf16.mxu0 0
    %1329 = vmatpush2.bf16.msra.mxu0 0
    %1330 = vmatprep.subr.bf16.mxu0 0
    %1331 = vmatpush2.bf16.msra.mxu0 0
    %1332 = vmatprep.subr.bf16.mxu0 0
    %1333 = vmatpush2.bf16.msra.mxu0 0
    %1334 = vmatprep.subr.bf16.mxu0 0
    %1335 = vmatpush2.bf16.msra.mxu0 0
    %1336 = vmatprep.subr.bf16.mxu0 0
    %1337 = vmatpush2.bf16.msra.mxu0 0
    %1338 = vmatprep.mubr.bf16.mxu0 0
    %1339 = vmatmul.mubr.bf16.gmra.mxu0 %v1234
    %v1340 = vpop.f32.mrf.mxu0
    %v1341 = vadd.f32 %v1256, %v1340
    %v1342 = vpop.f32.mrf.mxu0
    %v1343 = vpop.f32.mrf.mxu0
    %v1344 = vadd.f32 %v1256, %v1343
    %v1345 = vpop.f32.mrf.mxu0
    %1346 = vdwg.mxu0
    %1347 = vst [vmem:[#allocation14] sm:$0xff] %v1341
    %1348 = vst [vmem:[#allocation14 + $0x8] sm:$0xff] %v1344
    // Predicated region
    $region74: #{tpu_custom_call.1} parent=1 // pred_check
      _
    $region75: #{tpu_custom_call.1} parent=1 // pred_check_branch
      %1350 = sbr.rel (0) target = $region77
    $region76: #{tpu_custom_call.1} parent=1 // pred_region
      %s1352 = ssub.s32 256, 256
      %1353 = vsyncadd [#allocation4], %s1352
      %s1354 = sshll.u32 [#allocation14], 4
      %s1355 = int_to_ptr.vmem [resolvable:$true] %s1354
      %1360 = dma.vmem_to_hbm [thread:$0]  %s1355, 256, %s11, [#allocation4], 128, 128, 8
    $region77: #{tpu_custom_call.1} parent=1 // pred_fallthru
      _
    // Predicated region
    $region78: #{tpu_custom_call.1} parent=1 // pred_check
      _
    $region79: #{tpu_custom_call.1} parent=1 // pred_check_branch
      %1362 = sbr.rel (0) target = $region81
    $region80: #{tpu_custom_call.1} parent=1 // pred_region
      %1363 = dma.done [#allocation4], 256
    $region81: #{tpu_custom_call.1} parent=1 // pred_fallthru
      _
    %1364 = vsyncpa [#allocation3], 1
    %1365 = vsyncpa [#allocation6], 1
    %1366 = vsyncpa [#allocation9], 1
    %1367 = vsyncpa [#allocation12], 1
    %1368 = vsyncpa [#allocation4], 1

// kernel: tpu_custom_call.1
$region0: #{tpu_custom_call.1}
  #allocation0 [shape = 'u32[]', space=smem, size = 0x4, offset = 0x4, fixed_abs, tag = 'smem constant byte address 0x4 - core index']
  #allocation1 [shape = 'u32[144,128]{1,0:T(1,128)}', space=vmem, size = 0x12000, scoped, tag = 'internal scratch']
  %s0 = inlined_call_operand.hbm [shape: bf16[16,128], index: 0, kind: input, shape index: {}]
  %s1 = inlined_call_operand.hbm [shape: bf16[128,512], index: 1, kind: input, shape index: {}]
  %s2 = inlined_call_operand.hbm [shape: f32[1,512], index: 2, kind: input, shape index: {}]
  %s3 = inlined_call_operand.hbm [shape: bf16[512,256], index: 3, kind: input, shape index: {}]
  %s4 = inlined_call_operand.vmem [shape: f32[1,256], index: 4, kind: input, shape index: {}]
  %s5 = inlined_call_operand.hbm [shape: bf16[256,128], index: 5, kind: input, shape index: {}]
  %s6 = inlined_call_operand.vmem [shape: f32[1,128], index: 6, kind: input, shape index: {}]
  %s7 = inlined_call_operand.hbm [shape: bf16[128,128], index: 7, kind: input, shape index: {}]
  %s8 = inlined_call_operand.vmem [shape: f32[1,128], index: 8, kind: input, shape index: {}]
  %s9 = inlined_call_operand.hbm [shape: bf16[128,128], index: 9, kind: input, shape index: {}]
  %s10 = inlined_call_operand.vmem [shape: f32[1,128], index: 10, kind: input, shape index: {}]
  %s11 = inlined_call_operand.hbm [shape: f32[16,128], index: 11, kind: output, shape index: {}]
  %s12 = sld [smem:[#allocation0]]
  $region82: #{tpu_custom_call.1} parent=0
    _
  %s14 = ssub.s32 1, %s12
  %s15 = scalar_select 0, %s14, %s12
  $region1: #{tpu_custom_call.1} parent=0
    #allocation2 [shape = 'u8[4096]{0}', space=vmem, size = 0x1000, scoped, tag = 'input window, operand 0, single buffered']
    #allocation3 [shape = 's32[1]{0}', space=sflag, size = 0x4, scoped, tag = 'scoped memory for tpu_custom_call.1']
    #allocation4 [shape = 's32[1]{0}', space=sflag, size = 0x4, scoped, tag = 'scoped memory for tpu_custom_call.1']
    #allocation5 [shape = 'u8[131072]{0}', space=vmem, size = 0x20000, scoped, tag = 'input window, operand 1, single buffered']
    #allocation6 [shape = 's32[1]{0}', space=sflag, size = 0x4, scoped, tag = 'scoped memory for tpu_custom_call.1']
    #allocation7 [shape = 'u8[2048]{0}', space=vmem, size = 0x800, scoped, tag = 'input window, operand 2, single buffered']
    #allocation8 [shape = 'u8[262144]{0}', space=vmem, size = 0x40000, scoped, tag = 'input window, operand 3, single buffered']
    #allocation9 [shape = 's32[1]{0}', space=sflag, size = 0x4, scoped, tag = 'scoped memory for tpu_custom_call.1']
    #allocation10 [shape = 'u8[65536]{0}', space=vmem, size = 0x10000, scoped, tag = 'input window, operand 5, single buffered']
    #allocation11 [shape = 'u8[32768]{0}', space=vmem, size = 0x8000, scoped, tag = 'input window, operand 7, single buffered']
    #allocation12 [shape = 's32[1]{0}', space=sflag, size = 0x4, scoped, tag = 'scoped memory for tpu_custom_call.1']
    #allocation13 [shape = 'u8[32768]{0}', space=vmem, size = 0x8000, scoped, tag = 'input window, operand 9, single buffered']
    #allocation14 [shape = 'u8[8192]{0}', space=vmem, size = 0x2000, scoped, tag = 'output window, operand 0, single buffered']
    %16 = vsyncpa [#allocation3], 0
    %17 = vsyncpa [#allocation6], 0
    %18 = vsyncpa [#allocation9], 0
    %19 = vsyncpa [#allocation12], 0
    %20 = vsyncpa [#allocation4], 0
    // Predicated region
    $region2: #{tpu_custom_call.1} parent=1 // pred_check
      _
    $region3: #{tpu_custom_call.1} parent=1 // pred_check_branch
      %22 = sbr.rel (0) target = $region5
    $region4: #{tpu_custom_call.1} parent=1 // pred_region
      %s24 = ssub.s32 128, 128
      %25 = vsyncadd [#allocation3], %s24
      %s26 = sshll.u32 [#allocation2], 4
      %s27 = int_to_ptr.vmem [resolvable:$true] %s26
      %32 = dma.hbm_to_vmem [thread:$0]  %s0, 128, %s27, [#allocation3], 64, 64, 4
    $region5: #{tpu_custom_call.1} parent=1 // pred_fallthru
      _
    // Predicated region
    $region6: #{tpu_custom_call.1} parent=1 // pred_check
      _
    $region7: #{tpu_custom_call.1} parent=1 // pred_check_branch
      %34 = sbr.rel (0) target = $region9
    $region8: #{tpu_custom_call.1} parent=1 // pred_region
      %s36 = ssub.s32 4096, 4096
      %37 = vsyncadd [#allocation6], %s36
      %s38 = sshll.u32 [#allocation5], 4
      %s39 = int_to_ptr.vmem [resolvable:$true] %s38
      %44 = dma.hbm_to_vmem [thread:$0]  %s1, 4096, %s39, [#allocation6], 256, 256, 16
    $region9: #{tpu_custom_call.1} parent=1 // pred_fallthru
      _
    // Predicated region
    $region10: #{tpu_custom_call.1} parent=1 // pred_check
      _
    $region11: #{tpu_custom_call.1} parent=1 // pred_check_branch
      %46 = sbr.rel (0) target = $region13
    $region12: #{tpu_custom_call.1} parent=1 // pred_region
      %s48 = ssub.s32 64, 64
      %49 = vsyncadd [#allocation6], %s48
      %s51 = sshll.u32 [#allocation7], 4
      %s52 = int_to_ptr.vmem [resolvable:$true] %s51
      %54 = dma.hbm_to_vmem [thread:$0]  %s2, 64, %s52, [#allocation6]
    $region13: #{tpu_custom_call.1} parent=1 // pred_fallthru
      _
    // Predicated region
    $region14: #{tpu_custom_call.1} parent=1 // pred_check
      _
    $region15: #{tpu_custom_call.1} parent=1 // pred_check_branch
      %56 = sbr.rel (0) target = $region17
    $region16: #{tpu_custom_call.1} parent=1 // pred_region
      %s58 = ssub.s32 8192, 8192
      %59 = vsyncadd [#allocation9], %s58
      %s60 = sshll.u32 [#allocation8], 4
      %s61 = int_to_ptr.vmem [resolvable:$true] %s60
      %66 = dma.hbm_to_vmem [thread:$0]  %s3, 8192, %s61, [#allocation9], 128, 128, 8
    $region17: #{tpu_custom_call.1} parent=1 // pred_fallthru
      _
    // Predicated region
    $region18: #{tpu_custom_call.1} parent=1 // pred_check
      _
    $region19: #{tpu_custom_call.1} parent=1 // pred_check_branch
      %68 = sbr.rel (0) target = $region21
    $region20: #{tpu_custom_call.1} parent=1 // pred_region
      _
    $region21: #{tpu_custom_call.1} parent=1 // pred_fallthru
      _
    // Predicated region
    $region22: #{tpu_custom_call.1} parent=1 // pred_check
      _
    $region23: #{tpu_custom_call.1} parent=1 // pred_check_branch
      %70 = sbr.rel (0) target = $region25
    $region24: #{tpu_custom_call.1} parent=1 // pred_region
      %s72 = ssub.s32 2048, 2048
      %73 = vsyncadd [#allocation9], %s72
      %s74 = sshll.u32 [#allocation10], 4
      %s75 = int_to_ptr.vmem [resolvable:$true] %s74
      %80 = dma.hbm_to_vmem [thread:$0]  %s5, 2048, %s75, [#allocation9], 64, 64, 4
    $region25: #{tpu_custom_call.1} parent=1 // pred_fallthru
      _
    // Predicated region
    $region26: #{tpu_custom_call.1} parent=1 // pred_check
      _
    $region27: #{tpu_custom_call.1} parent=1 // pred_check_branch
      %82 = sbr.rel (0) target = $region29
    $region28: #{tpu_custom_call.1} parent=1 // pred_region
      _
    $region29: #{tpu_custom_call.1} parent=1 // pred_fallthru
      _
    // Predicated region
    $region30: #{tpu_custom_call.1} parent=1 // pred_check
      _
    $region31: #{tpu_custom_call.1} parent=1 // pred_check_branch
      %84 = sbr.rel (0) target = $region33
    $region32: #{tpu_custom_call.1} parent=1 // pred_region
      %s86 = ssub.s32 1024, 1024
      %87 = vsyncadd [#allocation12], %s86
      %s88 = sshll.u32 [#allocation11], 4
      %s89 = int_to_ptr.vmem [resolvable:$true] %s88
      %94 = dma.hbm_to_vmem [thread:$0]  %s7, 1024, %s89, [#allocation12], 64, 64, 4
    $region33: #{tpu_custom_call.1} parent=1 // pred_fallthru
      _
    // Predicated region
    $region34: #{tpu_custom_call.1} parent=1 // pred_check
      _
    $region35: #{tpu_custom_call.1} parent=1 // pred_check_branch
      %96 = sbr.rel (0) target = $region37
    $region36: #{tpu_custom_call.1} parent=1 // pred_region
      _
    $region37: #{tpu_custom_call.1} parent=1 // pred_fallthru
      _
    // Predicated region
    $region38: #{tpu_custom_call.1} parent=1 // pred_check
      _
    $region39: #{tpu_custom_call.1} parent=1 // pred_check_branch
      %98 = sbr.rel (0) target = $region41
    $region40: #{tpu_custom_call.1} parent=1 // pred_region
      %s100 = ssub.s32 1024, 1024
      %101 = vsyncadd [#allocation12], %s100
      %s102 = sshll.u32 [#allocation13], 4
      %s103 = int_to_ptr.vmem [resolvable:$true] %s102
      %108 = dma.hbm_to_vmem [thread:$0]  %s9, 1024, %s103, [#allocation12], 64, 64, 4
    $region41: #{tpu_custom_call.1} parent=1 // pred_fallthru
      _
    // Predicated region
    $region42: #{tpu_custom_call.1} parent=1 // pred_check
      _
    $region43: #{tpu_custom_call.1} parent=1 // pred_check_branch
      %110 = sbr.rel (0) target = $region45
    $region44: #{tpu_custom_call.1} parent=1 // pred_region
      _
    $region45: #{tpu_custom_call.1} parent=1 // pred_fallthru
      _
    // Predicated region
    $region46: #{tpu_custom_call.1} parent=1 // pred_check
      _
    $region47: #{tpu_custom_call.1} parent=1 // pred_check_branch
      %112 = sbr.rel (0) target = $region49
    $region48: #{tpu_custom_call.1} parent=1 // pred_region
      %113 = dma.done [#allocation3], 128
    $region49: #{tpu_custom_call.1} parent=1 // pred_fallthru
      _
    // Predicated region
    $region50: #{tpu_custom_call.1} parent=1 // pred_check
      _
    $region51: #{tpu_custom_call.1} parent=1 // pred_check_branch
      %115 = sbr.rel (0) target = $region53
    $region52: #{tpu_custom_call.1} parent=1 // pred_region
      %116 = dma.done [#allocation6], 4096
    $region53: #{tpu_custom_call.1} parent=1 // pred_fallthru
      _
    // Predicated region
    $region54: #{tpu_custom_call.1} parent=1 // pred_check
      _
    $region55: #{tpu_custom_call.1} parent=1 // pred_check_branch
      %118 = sbr.rel (0) target = $region57
    $region56: #{tpu_custom_call.1} parent=1 // pred_region
      %119 = dma.done [#allocation6], 64
    $region57: #{tpu_custom_call.1} parent=1 // pred_fallthru
      _
    // Predicated region
    $region58: #{tpu_custom_call.1} parent=1 // pred_check
      _
    $region59: #{tpu_custom_call.1} parent=1 // pred_check_branch
      %121 = sbr.rel (0) target = $region61
    $region60: #{tpu_custom_call.1} parent=1 // pred_region
      %122 = dma.done [#allocation9], 8192
    $region61: #{tpu_custom_call.1} parent=1 // pred_fallthru
      _
    // Predicated region
    $region62: #{tpu_custom_call.1} parent=1 // pred_check
      _
    $region63: #{tpu_custom_call.1} parent=1 // pred_check_branch
      %124 = sbr.rel (0) target = $region65
    $region64: #{tpu_custom_call.1} parent=1 // pred_region
      %125 = dma.done [#allocation9], 2048
    $region65: #{tpu_custom_call.1} parent=1 // pred_fallthru
      _
    // Predicated region
    $region66: #{tpu_custom_call.1} parent=1 // pred_check
      _
    $region67: #{tpu_custom_call.1} parent=1 // pred_check_branch
      %127 = sbr.rel (0) target = $region69
    $region68: #{tpu_custom_call.1} parent=1 // pred_region
      %128 = dma.done [#allocation12], 1024
    $region69: #{tpu_custom_call.1} parent=1 // pred_fallthru
      _
    // Predicated region
    $region70: #{tpu_custom_call.1} parent=1 // pred_check
      _
    $region71: #{tpu_custom_call.1} parent=1 // pred_check_branch
      %130 = sbr.rel (0) target = $region73
    $region72: #{tpu_custom_call.1} parent=1 // pred_region
      %131 = dma.done [#allocation12], 1024
    $region73: #{tpu_custom_call.1} parent=1 // pred_fallthru
      _
    %v133 = vld [vmem:[#allocation2] sm:$0xf]
    %v134 = vld [vmem:[#allocation2 + $0x4] sm:$0xf]
    %v135 = vld [vmem:[#allocation5] sm:$0xff]
    %v136 = vld [vmem:[#allocation5 + $0x8] sm:$0xff]
    %v137 = vld [vmem:[#allocation5 + $0x10] sm:$0xff]
    %v138 = vld [vmem:[#allocation5 + $0x18] sm:$0xff]
    %v139 = vld [vmem:[#allocation5 + $0x20] sm:$0xff]
    %v140 = vld [vmem:[#allocation5 + $0x28] sm:$0xff]
    %v141 = vld [vmem:[#allocation5 + $0x30] sm:$0xff]
    %v142 = vld [vmem:[#allocation5 + $0x38] sm:$0xff]
    %v143 = vld [vmem:[#allocation5 + $0x40] sm:$0xff]
    %v144 = vld [vmem:[#allocation5 + $0x48] sm:$0xff]
    %v145 = vld [vmem:[#allocation5 + $0x50] sm:$0xff]
    %v146 = vld [vmem:[#allocation5 + $0x58] sm:$0xff]
    %v147 = vld [vmem:[#allocation5 + $0x60] sm:$0xff]
    %v148 = vld [vmem:[#allocation5 + $0x68] sm:$0xff]
    %v149 = vld [vmem:[#allocation5 + $0x70] sm:$0xff]
    %v150 = vld [vmem:[#allocation5 + $0x78] sm:$0xff]
    %v151 = vld [vmem:[#allocation5 + $0x80] sm:$0xff]
    %v152 = vld [vmem:[#allocation5 + $0x88] sm:$0xff]
    %v153 = vld [vmem:[#allocation5 + $0x90] sm:$0xff]
    %v154 = vld [vmem:[#allocation5 + $0x98] sm:$0xff]
    %v155 = vld [vmem:[#allocation5 + $0xa0] sm:$0xff]
    %v156 = vld [vmem:[#allocation5 + $0xa8] sm:$0xff]
    %v157 = vld [vmem:[#allocation5 + $0xb0] sm:$0xff]
    %v158 = vld [vmem:[#allocation5 + $0xb8] sm:$0xff]
    %v159 = vld [vmem:[#allocation5 + $0xc0] sm:$0xff]
    %v160 = vld [vmem:[#allocation5 + $0xc8] sm:$0xff]
    %v161 = vld [vmem:[#allocation5 + $0xd0] sm:$0xff]
    %v162 = vld [vmem:[#allocation5 + $0xd8] sm:$0xff]
    %v163 = vld [vmem:[#allocation5 + $0xe0] sm:$0xff]
    %v164 = vld [vmem:[#allocation5 + $0xe8] sm:$0xff]
    %v165 = vld [vmem:[#allocation5 + $0xf0] sm:$0xff]
    %v166 = vld [vmem:[#allocation5 + $0xf8] sm:$0xff]
    %v167 = vld [vmem:[#allocation7] sm:$0xf]
    %v169 = vlaneseq
    %v170 = vshrl.u32 %v169, 7
    %v171 = vsub.s32 0, %v170
    %v172 = vrot.slane %v167, %v171
    %v173 = vlaneseq
    %v174 = vshrl.u32 %v173, 7
    %v175 = vsub.s32 1, %v174
    %v176 = vrot.slane %v167, %v175
    %v177 = vlaneseq
    %v178 = vshrl.u32 %v177, 7
    %v179 = vsub.s32 2, %v178
    %v180 = vrot.slane %v167, %v179
    %v181 = vlaneseq
    %v182 = vshrl.u32 %v181, 7
    %v183 = vsub.s32 3, %v182
    %v184 = vrot.slane %v167, %v183
    %v191 = vunpack.c.l.b16 %v133
    %v192 = vunpack.c.l.b16 %v134
    %v193 = vpack.c.b16 %v192, %v191
    %v227 = vunpack.c.l.b16 %v135
    %v228 = vunpack.c.h.b16 %v135
    %v229 = vunpack.c.l.b16 %v136
    %v230 = vunpack.c.h.b16 %v136
    %v231 = vunpack.c.l.b16 %v137
    %v232 = vunpack.c.h.b16 %v137
    %v233 = vunpack.c.l.b16 %v138
    %v234 = vunpack.c.h.b16 %v138
    %v235 = vunpack.c.l.b16 %v139
    %v236 = vunpack.c.h.b16 %v139
    %v237 = vunpack.c.l.b16 %v140
    %v238 = vunpack.c.h.b16 %v140
    %v239 = vunpack.c.l.b16 %v141
    %v240 = vunpack.c.h.b16 %v141
    %v241 = vunpack.c.l.b16 %v142
    %v242 = vunpack.c.h.b16 %v142
    %v243 = vunpack.c.l.b16 %v143
    %v244 = vunpack.c.h.b16 %v143
    %v245 = vunpack.c.l.b16 %v144
    %v246 = vunpack.c.h.b16 %v144
    %v247 = vunpack.c.l.b16 %v145
    %v248 = vunpack.c.h.b16 %v145
    %v249 = vunpack.c.l.b16 %v146
    %v250 = vunpack.c.h.b16 %v146
    %v251 = vunpack.c.l.b16 %v147
    %v252 = vunpack.c.h.b16 %v147
    %v253 = vunpack.c.l.b16 %v148
    %v254 = vunpack.c.h.b16 %v148
    %v255 = vunpack.c.l.b16 %v149
    %v256 = vunpack.c.h.b16 %v149
    %v257 = vunpack.c.l.b16 %v150
    %v258 = vunpack.c.h.b16 %v150
    %v259 = vunpack.c.l.b16 %v151
    %v260 = vunpack.c.h.b16 %v151
    %v261 = vunpack.c.l.b16 %v152
    %v262 = vunpack.c.h.b16 %v152
    %v263 = vunpack.c.l.b16 %v153
    %v264 = vunpack.c.h.b16 %v153
    %v265 = vunpack.c.l.b16 %v154
    %v266 = vunpack.c.h.b16 %v154
    %v267 = vunpack.c.l.b16 %v155
    %v268 = vunpack.c.h.b16 %v155
    %v269 = vunpack.c.l.b16 %v156
    %v270 = vunpack.c.h.b16 %v156
    %v271 = vunpack.c.l.b16 %v157
    %v272 = vunpack.c.h.b16 %v157
    %v273 = vunpack.c.l.b16 %v158
    %v274 = vunpack.c.h.b16 %v158
    %v275 = vunpack.c.l.b16 %v159
    %v276 = vunpack.c.h.b16 %v159
    %v277 = vunpack.c.l.b16 %v160
    %v278 = vunpack.c.h.b16 %v160
    %v279 = vunpack.c.l.b16 %v161
    %v280 = vunpack.c.h.b16 %v161
    %v281 = vunpack.c.l.b16 %v162
    %v282 = vunpack.c.h.b16 %v162
    %v283 = vunpack.c.l.b16 %v163
    %v284 = vunpack.c.h.b16 %v163
    %v285 = vunpack.c.l.b16 %v164
    %v286 = vunpack.c.h.b16 %v164
    %v287 = vunpack.c.l.b16 %v165
    %v288 = vunpack.c.h.b16 %v165
    %v289 = vunpack.c.l.b16 %v166
    %v290 = vunpack.c.h.b16 %v166
    %v291 = vpack.c.b16 %v231, %v227
    %v292 = vpack.c.b16 %v232, %v228
    %v293 = vpack.c.b16 %v233, %v229
    %v294 = vpack.c.b16 %v234, %v230
    %v295 = vpack.c.b16 %v239, %v235
    %v296 = vpack.c.b16 %v240, %v236
    %v297 = vpack.c.b16 %v241, %v237
    %v298 = vpack.c.b16 %v242, %v238
    %v299 = vpack.c.b16 %v247, %v243
    %v300 = vpack.c.b16 %v248, %v244
    %v301 = vpack.c.b16 %v249, %v245
    %v302 = vpack.c.b16 %v250, %v246
    %v303 = vpack.c.b16 %v255, %v251
    %v304 = vpack.c.b16 %v256, %v252
    %v305 = vpack.c.b16 %v257, %v253
    %v306 = vpack.c.b16 %v258, %v254
    %v307 = vpack.c.b16 %v263, %v259
    %v308 = vpack.c.b16 %v264, %v260
    %v309 = vpack.c.b16 %v265, %v261
    %v310 = vpack.c.b16 %v266, %v262
    %v311 = vpack.c.b16 %v271, %v267
    %v312 = vpack.c.b16 %v272, %v268
    %v313 = vpack.c.b16 %v273, %v269
    %v314 = vpack.c.b16 %v274, %v270
    %v315 = vpack.c.b16 %v279, %v275
    %v316 = vpack.c.b16 %v280, %v276
    %v317 = vpack.c.b16 %v281, %v277
    %v318 = vpack.c.b16 %v282, %v278
    %v319 = vpack.c.b16 %v287, %v283
    %v320 = vpack.c.b16 %v288, %v284
    %v321 = vpack.c.b16 %v289, %v285
    %v322 = vpack.c.b16 %v290, %v286
    %355 = vmatprep.subr.bf16.mxu0 %v320
    %356 = vmatpush1.bf16.msra.mxu0 %v319
    %357 = vmatprep.subr.bf16.mxu0 %v316
    %358 = vmatpush1.bf16.msra.mxu0 %v315
    %359 = vmatprep.subr.bf16.mxu0 %v312
    %360 = vmatpush1.bf16.msra.mxu0 %v311
    %361 = vmatprep.subr.bf16.mxu0 %v308
    %362 = vmatpush1.bf16.msra.mxu0 %v307
    %363 = vmatprep.subr.bf16.mxu0 %v304
    %364 = vmatpush1.bf16.msra.mxu0 %v303
    %365 = vmatprep.subr.bf16.mxu0 %v300
    %366 = vmatpush1.bf16.msra.mxu0 %v299
    %367 = vmatprep.subr.bf16.mxu0 %v296
    %368 = vmatpush1.bf16.msra.mxu0 %v295
    %369 = vmatprep.subr.bf16.mxu0 %v292
    %370 = vmatpush1.bf16.msra.mxu0 %v291
    %371 = vmatprep.subr.bf16.mxu0 0
    %372 = vmatpush2.bf16.msra.mxu0 0
    %373 = vmatprep.subr.bf16.mxu0 0
    %374 = vmatpush2.bf16.msra.mxu0 0
    %375 = vmatprep.subr.bf16.mxu0 0
    %376 = vmatpush2.bf16.msra.mxu0 0
    %377 = vmatprep.subr.bf16.mxu0 0
    %378 = vmatpush2.bf16.msra.mxu0 0
    %379 = vmatprep.subr.bf16.mxu0 0
    %380 = vmatpush2.bf16.msra.mxu0 0
    %381 = vmatprep.subr.bf16.mxu0 0
    %382 = vmatpush2.bf16.msra.mxu0 0
    %383 = vmatprep.subr.bf16.mxu0 0
    %384 = vmatpush2.bf16.msra.mxu0 0
    %385 = vmatprep.subr.bf16.mxu0 0
    %386 = vmatpush2.bf16.msra.mxu0 0
    %387 = vmatprep.mubr.bf16.mxu0 0
    %388 = vmatmul.mubr.bf16.gmra.mxu0 %v193
    %v389 = vpop.f32.mrf.mxu0
    %v390 = vadd.f32 %v172, %v389
    %v391 = vpop.f32.mrf.mxu0
    %v392 = vadd.f32 %v176, %v391
    %v393 = vpop.f32.mrf.mxu0
    %v394 = vadd.f32 %v172, %v393
    %v395 = vpop.f32.mrf.mxu0
    %v396 = vadd.f32 %v176, %v395
    %397 = vdwg.mxu0
    %398 = vmatprep.subr.bf16.mxu0 %v322
    %399 = vmatpush1.bf16.msra.mxu0 %v321
    %400 = vmatprep.subr.bf16.mxu0 %v318
    %401 = vmatpush1.bf16.msra.mxu0 %v317
    %402 = vmatprep.subr.bf16.mxu0 %v314
    %403 = vmatpush1.bf16.msra.mxu0 %v313
    %404 = vmatprep.subr.bf16.mxu0 %v310
    %405 = vmatpush1.bf16.msra.mxu0 %v309
    %406 = vmatprep.subr.bf16.mxu0 %v306
    %407 = vmatpush1.bf16.msra.mxu0 %v305
    %408 = vmatprep.subr.bf16.mxu0 %v302
    %409 = vmatpush1.bf16.msra.mxu0 %v301
    %410 = vmatprep.subr.bf16.mxu0 %v298
    %411 = vmatpush1.bf16.msra.mxu0 %v297
    %412 = vmatprep.subr.bf16.mxu0 %v294
    %413 = vmatpush1.bf16.msra.mxu0 %v293
    %414 = vmatprep.subr.bf16.mxu0 0
    %415 = vmatpush2.bf16.msra.mxu0 0
    %416 = vmatprep.subr.bf16.mxu0 0
    %417 = vmatpush2.bf16.msra.mxu0 0
    %418 = vmatprep.subr.bf16.mxu0 0
    %419 = vmatpush2.bf16.msra.mxu0 0
    %420 = vmatprep.subr.bf16.mxu0 0
    %421 = vmatpush2.bf16.msra.mxu0 0
    %422 = vmatprep.subr.bf16.mxu0 0
    %423 = vmatpush2.bf16.msra.mxu0 0
    %424 = vmatprep.subr.bf16.mxu0 0
    %425 = vmatpush2.bf16.msra.mxu0 0
    %426 = vmatprep.subr.bf16.mxu0 0
    %427 = vmatpush2.bf16.msra.mxu0 0
    %428 = vmatprep.subr.bf16.mxu0 0
    %429 = vmatpush2.bf16.msra.mxu0 0
    %430 = vmatprep.mubr.bf16.mxu0 0
    %431 = vmatmul.mubr.bf16.gmra.mxu0 %v193
    %v432 = vpop.f32.mrf.mxu0
    %v433 = vadd.f32 %v180, %v432
    %v434 = vpop.f32.mrf.mxu0
    %v435 = vadd.f32 %v184, %v434
    %v436 = vpop.f32.mrf.mxu0
    %v437 = vadd.f32 %v180, %v436
    %v438 = vpop.f32.mrf.mxu0
    %v439 = vadd.f32 %v184, %v438
    %440 = vdwg.mxu0
    %v441 = vmax.f32 %v390, 0.0
    %v442 = vmax.f32 %v392, 0.0
    %v443 = vmax.f32 %v433, 0.0
    %v444 = vmax.f32 %v435, 0.0
    %v445 = vmax.f32 %v394, 0.0
    %v446 = vmax.f32 %v396, 0.0
    %v447 = vmax.f32 %v437, 0.0
    %v448 = vmax.f32 %v439, 0.0
    %v449 = vpack.c.bf16 %v445, %v441
    %v450 = vpack.c.bf16 %v446, %v442
    %v451 = vpack.c.bf16 %v447, %v443
    %v452 = vpack.c.bf16 %v448, %v444
    %v453 = vld [vmem:[#allocation8] sm:$0xff]
    %v454 = vld [vmem:[#allocation8 + $0x8] sm:$0xff]
    %v455 = vld [vmem:[#allocation8 + $0x10] sm:$0xff]
    %v456 = vld [vmem:[#allocation8 + $0x18] sm:$0xff]
    %v457 = vld [vmem:[#allocation8 + $0x20] sm:$0xff]
    %v458 = vld [vmem:[#allocation8 + $0x28] sm:$0xff]
    %v459 = vld [vmem:[#allocation8 + $0x30] sm:$0xff]
    %v460 = vld [vmem:[#allocation8 + $0x38] sm:$0xff]
    %v461 = vld [vmem:[#allocation8 + $0x40] sm:$0xff]
    %v462 = vld [vmem:[#allocation8 + $0x48] sm:$0xff]
    %v463 = vld [vmem:[#allocation8 + $0x50] sm:$0xff]
    %v464 = vld [vmem:[#allocation8 + $0x58] sm:$0xff]
    %v465 = vld [vmem:[#allocation8 + $0x60] sm:$0xff]
    %v466 = vld [vmem:[#allocation8 + $0x68] sm:$0xff]
    %v467 = vld [vmem:[#allocation8 + $0x70] sm:$0xff]
    %v468 = vld [vmem:[#allocation8 + $0x78] sm:$0xff]
    %v469 = vld [vmem:[#allocation8 + $0x80] sm:$0xff]
    %v470 = vld [vmem:[#allocation8 + $0x88] sm:$0xff]
    %v471 = vld [vmem:[#allocation8 + $0x90] sm:$0xff]
    %v472 = vld [vmem:[#allocation8 + $0x98] sm:$0xff]
    %v473 = vld [vmem:[#allocation8 + $0xa0] sm:$0xff]
    %v474 = vld [vmem:[#allocation8 + $0xa8] sm:$0xff]
    %v475 = vld [vmem:[#allocation8 + $0xb0] sm:$0xff]
    %v476 = vld [vmem:[#allocation8 + $0xb8] sm:$0xff]
    %v477 = vld [vmem:[#allocation8 + $0xc0] sm:$0xff]
    %v478 = vld [vmem:[#allocation8 + $0xc8] sm:$0xff]
    %v479 = vld [vmem:[#allocation8 + $0xd0] sm:$0xff]
    %v480 = vld [vmem:[#allocation8 + $0xd8] sm:$0xff]
    %v481 = vld [vmem:[#allocation8 + $0xe0] sm:$0xff]
    %v482 = vld [vmem:[#allocation8 + $0xe8] sm:$0xff]
    %v483 = vld [vmem:[#allocation8 + $0xf0] sm:$0xff]
    %v484 = vld [vmem:[#allocation8 + $0xf8] sm:$0xff]
    %v485 = vld [vmem:[#allocation8 + $0x100] sm:$0xff]
    %v486 = vld [vmem:[#allocation8 + $0x108] sm:$0xff]
    %v487 = vld [vmem:[#allocation8 + $0x110] sm:$0xff]
    %v488 = vld [vmem:[#allocation8 + $0x118] sm:$0xff]
    %v489 = vld [vmem:[#allocation8 + $0x120] sm:$0xff]
    %v490 = vld [vmem:[#allocation8 + $0x128] sm:$0xff]
    %v491 = vld [vmem:[#allocation8 + $0x130] sm:$0xff]
    %v492 = vld [vmem:[#allocation8 + $0x138] sm:$0xff]
    %v493 = vld [vmem:[#allocation8 + $0x140] sm:$0xff]
    %v494 = vld [vmem:[#allocation8 + $0x148] sm:$0xff]
    %v495 = vld [vmem:[#allocation8 + $0x150] sm:$0xff]
    %v496 = vld [vmem:[#allocation8 + $0x158] sm:$0xff]
    %v497 = vld [vmem:[#allocation8 + $0x160] sm:$0xff]
    %v498 = vld [vmem:[#allocation8 + $0x168] sm:$0xff]
    %v499 = vld [vmem:[#allocation8 + $0x170] sm:$0xff]
    %v500 = vld [vmem:[#allocation8 + $0x178] sm:$0xff]
    %v501 = vld [vmem:[#allocation8 + $0x180] sm:$0xff]
    %v502 = vld [vmem:[#allocation8 + $0x188] sm:$0xff]
    %v503 = vld [vmem:[#allocation8 + $0x190] sm:$0xff]
    %v504 = vld [vmem:[#allocation8 + $0x198] sm:$0xff]
    %v505 = vld [vmem:[#allocation8 + $0x1a0] sm:$0xff]
    %v506 = vld [vmem:[#allocation8 + $0x1a8] sm:$0xff]
    %v507 = vld [vmem:[#allocation8 + $0x1b0] sm:$0xff]
    %v508 = vld [vmem:[#allocation8 + $0x1b8] sm:$0xff]
    %v509 = vld [vmem:[#allocation8 + $0x1c0] sm:$0xff]
    %v510 = vld [vmem:[#allocation8 + $0x1c8] sm:$0xff]
    %v511 = vld [vmem:[#allocation8 + $0x1d0] sm:$0xff]
    %v512 = vld [vmem:[#allocation8 + $0x1d8] sm:$0xff]
    %v513 = vld [vmem:[#allocation8 + $0x1e0] sm:$0xff]
    %v514 = vld [vmem:[#allocation8 + $0x1e8] sm:$0xff]
    %v515 = vld [vmem:[#allocation8 + $0x1f0] sm:$0xff]
    %v516 = vld [vmem:[#allocation8 + $0x1f8] sm:$0xff]
    %v517 = vld [vmem:[%s4] sm:$0x3]
    %v519 = vlaneseq
    %v520 = vshrl.u32 %v519, 7
    %v521 = vsub.s32 0, %v520
    %v522 = vrot.slane %v517, %v521
    %v523 = vlaneseq
    %v524 = vshrl.u32 %v523, 7
    %v525 = vsub.s32 1, %v524
    %v526 = vrot.slane %v517, %v525
    %v593 = vunpack.c.l.b16 %v453
    %v594 = vunpack.c.h.b16 %v453
    %v595 = vunpack.c.l.b16 %v454
    %v596 = vunpack.c.h.b16 %v454
    %v597 = vunpack.c.l.b16 %v455
    %v598 = vunpack.c.h.b16 %v455
    %v599 = vunpack.c.l.b16 %v456
    %v600 = vunpack.c.h.b16 %v456
    %v601 = vunpack.c.l.b16 %v457
    %v602 = vunpack.c.h.b16 %v457
    %v603 = vunpack.c.l.b16 %v458
    %v604 = vunpack.c.h.b16 %v458
    %v605 = vunpack.c.l.b16 %v459
    %v606 = vunpack.c.h.b16 %v459
    %v607 = vunpack.c.l.b16 %v460
    %v608 = vunpack.c.h.b16 %v460
    %v609 = vunpack.c.l.b16 %v461
    %v610 = vunpack.c.h.b16 %v461
    %v611 = vunpack.c.l.b16 %v462
    %v612 = vunpack.c.h.b16 %v462
    %v613 = vunpack.c.l.b16 %v463
    %v614 = vunpack.c.h.b16 %v463
    %v615 = vunpack.c.l.b16 %v464
    %v616 = vunpack.c.h.b16 %v464
    %v617 = vunpack.c.l.b16 %v465
    %v618 = vunpack.c.h.b16 %v465
    %v619 = vunpack.c.l.b16 %v466
    %v620 = vunpack.c.h.b16 %v466
    %v621 = vunpack.c.l.b16 %v467
    %v622 = vunpack.c.h.b16 %v467
    %v623 = vunpack.c.l.b16 %v468
    %v624 = vunpack.c.h.b16 %v468
    %v625 = vunpack.c.l.b16 %v469
    %v626 = vunpack.c.h.b16 %v469
    %v627 = vunpack.c.l.b16 %v470
    %v628 = vunpack.c.h.b16 %v470
    %v629 = vunpack.c.l.b16 %v471
    %v630 = vunpack.c.h.b16 %v471
    %v631 = vunpack.c.l.b16 %v472
    %v632 = vunpack.c.h.b16 %v472
    %v633 = vunpack.c.l.b16 %v473
    %v634 = vunpack.c.h.b16 %v473
    %v635 = vunpack.c.l.b16 %v474
    %v636 = vunpack.c.h.b16 %v474
    %v637 = vunpack.c.l.b16 %v475
    %v638 = vunpack.c.h.b16 %v475
    %v639 = vunpack.c.l.b16 %v476
    %v640 = vunpack.c.h.b16 %v476
    %v641 = vunpack.c.l.b16 %v477
    %v642 = vunpack.c.h.b16 %v477
    %v643 = vunpack.c.l.b16 %v478
    %v644 = vunpack.c.h.b16 %v478
    %v645 = vunpack.c.l.b16 %v479
    %v646 = vunpack.c.h.b16 %v479
    %v647 = vunpack.c.l.b16 %v480
    %v648 = vunpack.c.h.b16 %v480
    %v649 = vunpack.c.l.b16 %v481
    %v650 = vunpack.c.h.b16 %v481
    %v651 = vunpack.c.l.b16 %v482
    %v652 = vunpack.c.h.b16 %v482
    %v653 = vunpack.c.l.b16 %v483
    %v654 = vunpack.c.h.b16 %v483
    %v655 = vunpack.c.l.b16 %v484
    %v656 = vunpack.c.h.b16 %v484
    %v657 = vunpack.c.l.b16 %v485
    %v658 = vunpack.c.h.b16 %v485
    %v659 = vunpack.c.l.b16 %v486
    %v660 = vunpack.c.h.b16 %v486
    %v661 = vunpack.c.l.b16 %v487
    %v662 = vunpack.c.h.b16 %v487
    %v663 = vunpack.c.l.b16 %v488
    %v664 = vunpack.c.h.b16 %v488
    %v665 = vunpack.c.l.b16 %v489
    %v666 = vunpack.c.h.b16 %v489
    %v667 = vunpack.c.l.b16 %v490
    %v668 = vunpack.c.h.b16 %v490
    %v669 = vunpack.c.l.b16 %v491
    %v670 = vunpack.c.h.b16 %v491
    %v671 = vunpack.c.l.b16 %v492
    %v672 = vunpack.c.h.b16 %v492
    %v673 = vunpack.c.l.b16 %v493
    %v674 = vunpack.c.h.b16 %v493
    %v675 = vunpack.c.l.b16 %v494
    %v676 = vunpack.c.h.b16 %v494
    %v677 = vunpack.c.l.b16 %v495
    %v678 = vunpack.c.h.b16 %v495
    %v679 = vunpack.c.l.b16 %v496
    %v680 = vunpack.c.h.b16 %v496
    %v681 = vunpack.c.l.b16 %v497
    %v682 = vunpack.c.h.b16 %v497
    %v683 = vunpack.c.l.b16 %v498
    %v684 = vunpack.c.h.b16 %v498
    %v685 = vunpack.c.l.b16 %v499
    %v686 = vunpack.c.h.b16 %v499
    %v687 = vunpack.c.l.b16 %v500
    %v688 = vunpack.c.h.b16 %v500
    %v689 = vunpack.c.l.b16 %v501
    %v690 = vunpack.c.h.b16 %v501
    %v691 = vunpack.c.l.b16 %v502
    %v692 = vunpack.c.h.b16 %v502
    %v693 = vunpack.c.l.b16 %v503
    %v694 = vunpack.c.h.b16 %v503
    %v695 = vunpack.c.l.b16 %v504
    %v696 = vunpack.c.h.b16 %v504
    %v697 = vunpack.c.l.b16 %v505
    %v698 = vunpack.c.h.b16 %v505
    %v699 = vunpack.c.l.b16 %v506
    %v700 = vunpack.c.h.b16 %v506
    %v701 = vunpack.c.l.b16 %v507
    %v702 = vunpack.c.h.b16 %v507
    %v703 = vunpack.c.l.b16 %v508
    %v704 = vunpack.c.h.b16 %v508
    %v705 = vunpack.c.l.b16 %v509
    %v706 = vunpack.c.h.b16 %v509
    %v707 = vunpack.c.l.b16 %v510
    %v708 = vunpack.c.h.b16 %v510
    %v709 = vunpack.c.l.b16 %v511
    %v710 = vunpack.c.h.b16 %v511
    %v711 = vunpack.c.l.b16 %v512
    %v712 = vunpack.c.h.b16 %v512
    %v713 = vunpack.c.l.b16 %v513
    %v714 = vunpack.c.h.b16 %v513
    %v715 = vunpack.c.l.b16 %v514
    %v716 = vunpack.c.h.b16 %v514
    %v717 = vunpack.c.l.b16 %v515
    %v718 = vunpack.c.h.b16 %v515
    %v719 = vunpack.c.l.b16 %v516
    %v720 = vunpack.c.h.b16 %v516
    %v721 = vpack.c.b16 %v595, %v593
    %v722 = vpack.c.b16 %v596, %v594
    %v723 = vpack.c.b16 %v599, %v597
    %v724 = vpack.c.b16 %v600, %v598
    %v725 = vpack.c.b16 %v603, %v601
    %v726 = vpack.c.b16 %v604, %v602
    %v727 = vpack.c.b16 %v607, %v605
    %v728 = vpack.c.b16 %v608, %v606
    %v729 = vpack.c.b16 %v611, %v609
    %v730 = vpack.c.b16 %v612, %v610
    %v731 = vpack.c.b16 %v615, %v613
    %v732 = vpack.c.b16 %v616, %v614
    %v733 = vpack.c.b16 %v619, %v617
    %v734 = vpack.c.b16 %v620, %v618
    %v735 = vpack.c.b16 %v623, %v621
    %v736 = vpack.c.b16 %v624, %v622
    %v737 = vpack.c.b16 %v627, %v625
    %v738 = vpack.c.b16 %v628, %v626
    %v739 = vpack.c.b16 %v631, %v629
    %v740 = vpack.c.b16 %v632, %v630
    %v741 = vpack.c.b16 %v635, %v633
    %v742 = vpack.c.b16 %v636, %v634
    %v743 = vpack.c.b16 %v639, %v637
    %v744 = vpack.c.b16 %v640, %v638
    %v745 = vpack.c.b16 %v643, %v641
    %v746 = vpack.c.b16 %v644, %v642
    %v747 = vpack.c.b16 %v647, %v645
    %v748 = vpack.c.b16 %v648, %v646
    %v749 = vpack.c.b16 %v651, %v649
    %v750 = vpack.c.b16 %v652, %v650
    %v751 = vpack.c.b16 %v655, %v653
    %v752 = vpack.c.b16 %v656, %v654
    %v753 = vpack.c.b16 %v659, %v657
    %v754 = vpack.c.b16 %v660, %v658
    %v755 = vpack.c.b16 %v663, %v661
    %v756 = vpack.c.b16 %v664, %v662
    %v757 = vpack.c.b16 %v667, %v665
    %v758 = vpack.c.b16 %v668, %v666
    %v759 = vpack.c.b16 %v671, %v669
    %v760 = vpack.c.b16 %v672, %v670
    %v761 = vpack.c.b16 %v675, %v673
    %v762 = vpack.c.b16 %v676, %v674
    %v763 = vpack.c.b16 %v679, %v677
    %v764 = vpack.c.b16 %v680, %v678
    %v765 = vpack.c.b16 %v683, %v681
    %v766 = vpack.c.b16 %v684, %v682
    %v767 = vpack.c.b16 %v687, %v685
    %v768 = vpack.c.b16 %v688, %v686
    %v769 = vpack.c.b16 %v691, %v689
    %v770 = vpack.c.b16 %v692, %v690
    %v771 = vpack.c.b16 %v695, %v693
    %v772 = vpack.c.b16 %v696, %v694
    %v773 = vpack.c.b16 %v699, %v697
    %v774 = vpack.c.b16 %v700, %v698
    %v775 = vpack.c.b16 %v703, %v701
    %v776 = vpack.c.b16 %v704, %v702
    %v777 = vpack.c.b16 %v707, %v705
    %v778 = vpack.c.b16 %v708, %v706
    %v779 = vpack.c.b16 %v711, %v709
    %v780 = vpack.c.b16 %v712, %v710
    %v781 = vpack.c.b16 %v715, %v713
    %v782 = vpack.c.b16 %v716, %v714
    %v783 = vpack.c.b16 %v719, %v717
    %v784 = vpack.c.b16 %v720, %v718
    %849 = vmatprep.subr.bf16.mxu0 %v736
    %850 = vmatpush1.bf16.msra.mxu0 %v735
    %851 = vmatprep.subr.bf16.mxu0 %v734
    %852 = vmatpush1.bf16.msra.mxu0 %v733
    %853 = vmatprep.subr.bf16.mxu0 %v732
    %854 = vmatpush1.bf16.msra.mxu0 %v731
    %855 = vmatprep.subr.bf16.mxu0 %v730
    %856 = vmatpush1.bf16.msra.mxu0 %v729
    %857 = vmatprep.subr.bf16.mxu0 %v728
    %858 = vmatpush1.bf16.msra.mxu0 %v727
    %859 = vmatprep.subr.bf16.mxu0 %v726
    %860 = vmatpush1.bf16.msra.mxu0 %v725
    %861 = vmatprep.subr.bf16.mxu0 %v724
    %862 = vmatpush1.bf16.msra.mxu0 %v723
    %863 = vmatprep.subr.bf16.mxu0 %v722
    %864 = vmatpush1.bf16.msra.mxu0 %v721
    %865 = vmatprep.subr.bf16.mxu0 %v752
    %866 = vmatpush2.bf16.msra.mxu0 %v751
    %867 = vmatprep.subr.bf16.mxu0 %v750
    %868 = vmatpush2.bf16.msra.mxu0 %v749
    %869 = vmatprep.subr.bf16.mxu0 %v748
    %870 = vmatpush2.bf16.msra.mxu0 %v747
    %871 = vmatprep.subr.bf16.mxu0 %v746
    %872 = vmatpush2.bf16.msra.mxu0 %v745
    %873 = vmatprep.subr.bf16.mxu0 %v744
    %874 = vmatpush2.bf16.msra.mxu0 %v743
    %875 = vmatprep.subr.bf16.mxu0 %v742
    %876 = vmatpush2.bf16.msra.mxu0 %v741
    %877 = vmatprep.subr.bf16.mxu0 %v740
    %878 = vmatpush2.bf16.msra.mxu0 %v739
    %879 = vmatprep.subr.bf16.mxu0 %v738
    %880 = vmatpush2.bf16.msra.mxu0 %v737
    %881 = vmatprep.mubr.bf16.mxu0 %v450
    %882 = vmatmul.mubr.bf16.gmra.mxu0 %v449
    %v883 = vpop.f32.mrf.mxu0
    %v884 = vadd.f32 %v522, %v883
    %v885 = vpop.f32.mrf.mxu0
    %v886 = vadd.f32 %v526, %v885
    %v887 = vpop.f32.mrf.mxu0
    %v888 = vadd.f32 %v522, %v887
    %v889 = vpop.f32.mrf.mxu0
    %v890 = vadd.f32 %v526, %v889
    %891 = vdwg.mxu0
    %892 = vmatprep.subr.bf16.mxu0 %v768
    %893 = vmatpush1.bf16.msra.mxu0 %v767
    %894 = vmatprep.subr.bf16.mxu0 %v766
    %895 = vmatpush1.bf16.msra.mxu0 %v765
    %896 = vmatprep.subr.bf16.mxu0 %v764
    %897 = vmatpush1.bf16.msra.mxu0 %v763
    %898 = vmatprep.subr.bf16.mxu0 %v762
    %899 = vmatpush1.bf16.msra.mxu0 %v761
    %900 = vmatprep.subr.bf16.mxu0 %v760
    %901 = vmatpush1.bf16.msra.mxu0 %v759
    %902 = vmatprep.subr.bf16.mxu0 %v758
    %903 = vmatpush1.bf16.msra.mxu0 %v757
    %904 = vmatprep.subr.bf16.mxu0 %v756
    %905 = vmatpush1.bf16.msra.mxu0 %v755
    %906 = vmatprep.subr.bf16.mxu0 %v754
    %907 = vmatpush1.bf16.msra.mxu0 %v753
    %908 = vmatprep.subr.bf16.mxu0 %v784
    %909 = vmatpush2.bf16.msra.mxu0 %v783
    %910 = vmatprep.subr.bf16.mxu0 %v782
    %911 = vmatpush2.bf16.msra.mxu0 %v781
    %912 = vmatprep.subr.bf16.mxu0 %v780
    %913 = vmatpush2.bf16.msra.mxu0 %v779
    %914 = vmatprep.subr.bf16.mxu0 %v778
    %915 = vmatpush2.bf16.msra.mxu0 %v777
    %916 = vmatprep.subr.bf16.mxu0 %v776
    %917 = vmatpush2.bf16.msra.mxu0 %v775
    %918 = vmatprep.subr.bf16.mxu0 %v774
    %919 = vmatpush2.bf16.msra.mxu0 %v773
    %920 = vmatprep.subr.bf16.mxu0 %v772
    %921 = vmatpush2.bf16.msra.mxu0 %v771
    %922 = vmatprep.subr.bf16.mxu0 %v770
    %923 = vmatpush2.bf16.msra.mxu0 %v769
    %924 = vmatprep.mubr.bf16.mxu0 %v452
    %925 = vmatmul.mubr.bf16.gmra.mxu0 %v451
    %v926 = vpop.f32.mrf.mxu0
    %v927 = vadd.f32 %v884, %v926
    %v928 = vpop.f32.mrf.mxu0
    %v929 = vadd.f32 %v886, %v928
    %v930 = vpop.f32.mrf.mxu0
    %v931 = vadd.f32 %v888, %v930
    %v932 = vpop.f32.mrf.mxu0
    %v933 = vadd.f32 %v890, %v932
    %934 = vdwg.mxu0
    %v935 = vmax.f32 %v927, 0.0
    %v936 = vmax.f32 %v929, 0.0
    %v937 = vmax.f32 %v931, 0.0
    %v938 = vmax.f32 %v933, 0.0
    %v939 = vpack.c.bf16 %v937, %v935
    %v940 = vpack.c.bf16 %v938, %v936
    %v941 = vld [vmem:[#allocation10] sm:$0xf]
    %v942 = vld [vmem:[#allocation10 + $0x4] sm:$0xf]
    %v943 = vld [vmem:[#allocation10 + $0x8] sm:$0xf]
    %v944 = vld [vmem:[#allocation10 + $0xc] sm:$0xf]
    %v945 = vld [vmem:[#allocation10 + $0x10] sm:$0xf]
    %v946 = vld [vmem:[#allocation10 + $0x14] sm:$0xf]
    %v947 = vld [vmem:[#allocation10 + $0x18] sm:$0xf]
    %v948 = vld [vmem:[#allocation10 + $0x1c] sm:$0xf]
    %v949 = vld [vmem:[#allocation10 + $0x20] sm:$0xf]
    %v950 = vld [vmem:[#allocation10 + $0x24] sm:$0xf]
    %v951 = vld [vmem:[#allocation10 + $0x28] sm:$0xf]
    %v952 = vld [vmem:[#allocation10 + $0x2c] sm:$0xf]
    %v953 = vld [vmem:[#allocation10 + $0x30] sm:$0xf]
    %v954 = vld [vmem:[#allocation10 + $0x34] sm:$0xf]
    %v955 = vld [vmem:[#allocation10 + $0x38] sm:$0xf]
    %v956 = vld [vmem:[#allocation10 + $0x3c] sm:$0xf]
    %v957 = vld [vmem:[#allocation10 + $0x40] sm:$0xf]
    %v958 = vld [vmem:[#allocation10 + $0x44] sm:$0xf]
    %v959 = vld [vmem:[#allocation10 + $0x48] sm:$0xf]
    %v960 = vld [vmem:[#allocation10 + $0x4c] sm:$0xf]
    %v961 = vld [vmem:[#allocation10 + $0x50] sm:$0xf]
    %v962 = vld [vmem:[#allocation10 + $0x54] sm:$0xf]
    %v963 = vld [vmem:[#allocation10 + $0x58] sm:$0xf]
    %v964 = vld [vmem:[#allocation10 + $0x5c] sm:$0xf]
    %v965 = vld [vmem:[#allocation10 + $0x60] sm:$0xf]
    %v966 = vld [vmem:[#allocation10 + $0x64] sm:$0xf]
    %v967 = vld [vmem:[#allocation10 + $0x68] sm:$0xf]
    %v968 = vld [vmem:[#allocation10 + $0x6c] sm:$0xf]
    %v969 = vld [vmem:[#allocation10 + $0x70] sm:$0xf]
    %v970 = vld [vmem:[#allocation10 + $0x74] sm:$0xf]
    %v971 = vld [vmem:[#allocation10 + $0x78] sm:$0xf]
    %v972 = vld [vmem:[#allocation10 + $0x7c] sm:$0xf]
    %v973 = vld [vmem:[%s6] sm:$0x1]
    %v975 = vlaneseq
    %v976 = vshrl.u32 %v975, 7
    %v977 = vsub.s32 0, %v976
    %v978 = vrot.slane %v973, %v977
    %v1012 = vunpack.c.l.b16 %v941
    %v1013 = vunpack.c.l.b16 %v942
    %v1014 = vunpack.c.l.b16 %v943
    %v1015 = vunpack.c.l.b16 %v944
    %v1016 = vunpack.c.l.b16 %v945
    %v1017 = vunpack.c.l.b16 %v946
    %v1018 = vunpack.c.l.b16 %v947
    %v1019 = vunpack.c.l.b16 %v948
    %v1020 = vunpack.c.l.b16 %v949
    %v1021 = vunpack.c.l.b16 %v950
    %v1022 = vunpack.c.l.b16 %v951
    %v1023 = vunpack.c.l.b16 %v952
    %v1024 = vunpack.c.l.b16 %v953
    %v1025 = vunpack.c.l.b16 %v954
    %v1026 = vunpack.c.l.b16 %v955
    %v1027 = vunpack.c.l.b16 %v956
    %v1028 = vunpack.c.l.b16 %v957
    %v1029 = vunpack.c.l.b16 %v958
    %v1030 = vunpack.c.l.b16 %v959
    %v1031 = vunpack.c.l.b16 %v960
    %v1032 = vunpack.c.l.b16 %v961
    %v1033 = vunpack.c.l.b16 %v962
    %v1034 = vunpack.c.l.b16 %v963
    %v1035 = vunpack.c.l.b16 %v964
    %v1036 = vunpack.c.l.b16 %v965
    %v1037 = vunpack.c.l.b16 %v966
    %v1038 = vunpack.c.l.b16 %v967
    %v1039 = vunpack.c.l.b16 %v968
    %v1040 = vunpack.c.l.b16 %v969
    %v1041 = vunpack.c.l.b16 %v970
    %v1042 = vunpack.c.l.b16 %v971
    %v1043 = vunpack.c.l.b16 %v972
    %v1044 = vpack.c.b16 %v1013, %v1012
    %v1045 = vpack.c.b16 %v1015, %v1014
    %v1046 = vpack.c.b16 %v1017, %v1016
    %v1047 = vpack.c.b16 %v1019, %v1018
    %v1048 = vpack.c.b16 %v1021, %v1020
    %v1049 = vpack.c.b16 %v1023, %v1022
    %v1050 = vpack.c.b16 %v1025, %v1024
    %v1051 = vpack.c.b16 %v1027, %v1026
    %v1052 = vpack.c.b16 %v1029, %v1028
    %v1053 = vpack.c.b16 %v1031, %v1030
    %v1054 = vpack.c.b16 %v1033, %v1032
    %v1055 = vpack.c.b16 %v1035, %v1034
    %v1056 = vpack.c.b16 %v1037, %v1036
    %v1057 = vpack.c.b16 %v1039, %v1038
    %v1058 = vpack.c.b16 %v1041, %v1040
    %v1059 = vpack.c.b16 %v1043, %v1042
    %1076 = vmatprep.subr.bf16.mxu0 0
    %1077 = vmatpush1.bf16.msra.mxu0 %v1051
    %1078 = vmatprep.subr.bf16.mxu0 0
    %1079 = vmatpush1.bf16.msra.mxu0 %v1050
    %1080 = vmatprep.subr.bf16.mxu0 0
    %1081 = vmatpush1.bf16.msra.mxu0 %v1049
    %1082 = vmatprep.subr.bf16.mxu0 0
    %1083 = vmatpush1.bf16.msra.mxu0 %v1048
    %1084 = vmatprep.subr.bf16.mxu0 0
    %1085 = vmatpush1.bf16.msra.mxu0 %v1047
    %1086 = vmatprep.subr.bf16.mxu0 0
    %1087 = vmatpush1.bf16.msra.mxu0 %v1046
    %1088 = vmatprep.subr.bf16.mxu0 0
    %1089 = vmatpush1.bf16.msra.mxu0 %v1045
    %1090 = vmatprep.subr.bf16.mxu0 0
    %1091 = vmatpush1.bf16.msra.mxu0 %v1044
    %1092 = vmatprep.subr.bf16.mxu0 0
    %1093 = vmatpush2.bf16.msra.mxu0 %v1059
    %1094 = vmatprep.subr.bf16.mxu0 0
    %1095 = vmatpush2.bf16.msra.mxu0 %v1058
    %1096 = vmatprep.subr.bf16.mxu0 0
    %1097 = vmatpush2.bf16.msra.mxu0 %v1057
    %1098 = vmatprep.subr.bf16.mxu0 0
    %1099 = vmatpush2.bf16.msra.mxu0 %v1056
    %1100 = vmatprep.subr.bf16.mxu0 0
    %1101 = vmatpush2.bf16.msra.mxu0 %v1055
    %1102 = vmatprep.subr.bf16.mxu0 0
    %1103 = vmatpush2.bf16.msra.mxu0 %v1054
    %1104 = vmatprep.subr.bf16.mxu0 0
    %1105 = vmatpush2.bf16.msra.mxu0 %v1053
    %1106 = vmatprep.subr.bf16.mxu0 0
    %1107 = vmatpush2.bf16.msra.mxu0 %v1052
    %1108 = vmatprep.mubr.bf16.mxu0 %v940
    %1109 = vmatmul.mubr.bf16.gmra.mxu0 %v939
    %v1110 = vpop.f32.mrf.mxu0
    %v1111 = vadd.f32 %v978, %v1110
    %v1112 = vpop.f32.mrf.mxu0
    %v1113 = vpop.f32.mrf.mxu0
    %v1114 = vadd.f32 %v978, %v1113
    %v1115 = vpop.f32.mrf.mxu0
    %1116 = vdwg.mxu0
    %v1117 = vmax.f32 %v1111, 0.0
    %v1118 = vmax.f32 %v1114, 0.0
    %v1119 = vpack.c.bf16 %v1118, %v1117
    %v1120 = vld [vmem:[#allocation11] sm:$0xf]
    %v1121 = vld [vmem:[#allocation11 + $0x4] sm:$0xf]
    %v1122 = vld [vmem:[#allocation11 + $0x8] sm:$0xf]
    %v1123 = vld [vmem:[#allocation11 + $0xc] sm:$0xf]
    %v1124 = vld [vmem:[#allocation11 + $0x10] sm:$0xf]
    %v1125 = vld [vmem:[#allocation11 + $0x14] sm:$0xf]
    %v1126 = vld [vmem:[#allocation11 + $0x18] sm:$0xf]
    %v1127 = vld [vmem:[#allocation11 + $0x1c] sm:$0xf]
    %v1128 = vld [vmem:[#allocation11 + $0x20] sm:$0xf]
    %v1129 = vld [vmem:[#allocation11 + $0x24] sm:$0xf]
    %v1130 = vld [vmem:[#allocation11 + $0x28] sm:$0xf]
    %v1131 = vld [vmem:[#allocation11 + $0x2c] sm:$0xf]
    %v1132 = vld [vmem:[#allocation11 + $0x30] sm:$0xf]
    %v1133 = vld [vmem:[#allocation11 + $0x34] sm:$0xf]
    %v1134 = vld [vmem:[#allocation11 + $0x38] sm:$0xf]
    %v1135 = vld [vmem:[#allocation11 + $0x3c] sm:$0xf]
    %v1136 = vld [vmem:[%s8] sm:$0x1]
    %v1138 = vlaneseq
    %v1139 = vshrl.u32 %v1138, 7
    %v1140 = vsub.s32 0, %v1139
    %v1141 = vrot.slane %v1136, %v1140
    %v1159 = vunpack.c.l.b16 %v1120
    %v1160 = vunpack.c.l.b16 %v1121
    %v1161 = vunpack.c.l.b16 %v1122
    %v1162 = vunpack.c.l.b16 %v1123
    %v1163 = vunpack.c.l.b16 %v1124
    %v1164 = vunpack.c.l.b16 %v1125
    %v1165 = vunpack.c.l.b16 %v1126
    %v1166 = vunpack.c.l.b16 %v1127
    %v1167 = vunpack.c.l.b16 %v1128
    %v1168 = vunpack.c.l.b16 %v1129
    %v1169 = vunpack.c.l.b16 %v1130
    %v1170 = vunpack.c.l.b16 %v1131
    %v1171 = vunpack.c.l.b16 %v1132
    %v1172 = vunpack.c.l.b16 %v1133
    %v1173 = vunpack.c.l.b16 %v1134
    %v1174 = vunpack.c.l.b16 %v1135
    %v1175 = vpack.c.b16 %v1160, %v1159
    %v1176 = vpack.c.b16 %v1162, %v1161
    %v1177 = vpack.c.b16 %v1164, %v1163
    %v1178 = vpack.c.b16 %v1166, %v1165
    %v1179 = vpack.c.b16 %v1168, %v1167
    %v1180 = vpack.c.b16 %v1170, %v1169
    %v1181 = vpack.c.b16 %v1172, %v1171
    %v1182 = vpack.c.b16 %v1174, %v1173
    %1191 = vmatprep.subr.bf16.mxu0 0
    %1192 = vmatpush1.bf16.msra.mxu0 %v1182
    %1193 = vmatprep.subr.bf16.mxu0 0
    %1194 = vmatpush1.bf16.msra.mxu0 %v1181
    %1195 = vmatprep.subr.bf16.mxu0 0
    %1196 = vmatpush1.bf16.msra.mxu0 %v1180
    %1197 = vmatprep.subr.bf16.mxu0 0
    %1198 = vmatpush1.bf16.msra.mxu0 %v1179
    %1199 = vmatprep.subr.bf16.mxu0 0
    %1200 = vmatpush1.bf16.msra.mxu0 %v1178
    %1201 = vmatprep.subr.bf16.mxu0 0
    %1202 = vmatpush1.bf16.msra.mxu0 %v1177
    %1203 = vmatprep.subr.bf16.mxu0 0
    %1204 = vmatpush1.bf16.msra.mxu0 %v1176
    %1205 = vmatprep.subr.bf16.mxu0 0
    %1206 = vmatpush1.bf16.msra.mxu0 %v1175
    %1207 = vmatprep.subr.bf16.mxu0 0
    %1208 = vmatpush2.bf16.msra.mxu0 0
    %1209 = vmatprep.subr.bf16.mxu0 0
    %1210 = vmatpush2.bf16.msra.mxu0 0
    %1211 = vmatprep.subr.bf16.mxu0 0
    %1212 = vmatpush2.bf16.msra.mxu0 0
    %1213 = vmatprep.subr.bf16.mxu0 0
    %1214 = vmatpush2.bf16.msra.mxu0 0
    %1215 = vmatprep.subr.bf16.mxu0 0
    %1216 = vmatpush2.bf16.msra.mxu0 0
    %1217 = vmatprep.subr.bf16.mxu0 0
    %1218 = vmatpush2.bf16.msra.mxu0 0
    %1219 = vmatprep.subr.bf16.mxu0 0
    %1220 = vmatpush2.bf16.msra.mxu0 0
    %1221 = vmatprep.subr.bf16.mxu0 0
    %1222 = vmatpush2.bf16.msra.mxu0 0
    %1223 = vmatprep.mubr.bf16.mxu0 0
    %1224 = vmatmul.mubr.bf16.gmra.mxu0 %v1119
    %v1225 = vpop.f32.mrf.mxu0
    %v1226 = vadd.f32 %v1141, %v1225
    %v1227 = vpop.f32.mrf.mxu0
    %v1228 = vpop.f32.mrf.mxu0
    %v1229 = vadd.f32 %v1141, %v1228
    %v1230 = vpop.f32.mrf.mxu0
    %1231 = vdwg.mxu0
    %v1232 = vmax.f32 %v1226, 0.0
    %v1233 = vmax.f32 %v1229, 0.0
    %v1234 = vpack.c.bf16 %v1233, %v1232
    %v1235 = vld [vmem:[#allocation13] sm:$0xf]
    %v1236 = vld [vmem:[#allocation13 + $0x4] sm:$0xf]
    %v1237 = vld [vmem:[#allocation13 + $0x8] sm:$0xf]
    %v1238 = vld [vmem:[#allocation13 + $0xc] sm:$0xf]
    %v1239 = vld [vmem:[#allocation13 + $0x10] sm:$0xf]
    %v1240 = vld [vmem:[#allocation13 + $0x14] sm:$0xf]
    %v1241 = vld [vmem:[#allocation13 + $0x18] sm:$0xf]
    %v1242 = vld [vmem:[#allocation13 + $0x1c] sm:$0xf]
    %v1243 = vld [vmem:[#allocation13 + $0x20] sm:$0xf]
    %v1244 = vld [vmem:[#allocation13 + $0x24] sm:$0xf]
    %v1245 = vld [vmem:[#allocation13 + $0x28] sm:$0xf]
    %v1246 = vld [vmem:[#allocation13 + $0x2c] sm:$0xf]
    %v1247 = vld [vmem:[#allocation13 + $0x30] sm:$0xf]
    %v1248 = vld [vmem:[#allocation13 + $0x34] sm:$0xf]
    %v1249 = vld [vmem:[#allocation13 + $0x38] sm:$0xf]
    %v1250 = vld [vmem:[#allocation13 + $0x3c] sm:$0xf]
    %v1251 = vld [vmem:[%s10] sm:$0x1]
    %v1253 = vlaneseq
    %v1254 = vshrl.u32 %v1253, 7
    %v1255 = vsub.s32 0, %v1254
    %v1256 = vrot.slane %v1251, %v1255
    %v1274 = vunpack.c.l.b16 %v1235
    %v1275 = vunpack.c.l.b16 %v1236
    %v1276 = vunpack.c.l.b16 %v1237
    %v1277 = vunpack.c.l.b16 %v1238
    %v1278 = vunpack.c.l.b16 %v1239
    %v1279 = vunpack.c.l.b16 %v1240
    %v1280 = vunpack.c.l.b16 %v1241
    %v1281 = vunpack.c.l.b16 %v1242
    %v1282 = vunpack.c.l.b16 %v1243
    %v1283 = vunpack.c.l.b16 %v1244
    %v1284 = vunpack.c.l.b16 %v1245
    %v1285 = vunpack.c.l.b16 %v1246
    %v1286 = vunpack.c.l.b16 %v1247
    %v1287 = vunpack.c.l.b16 %v1248
    %v1288 = vunpack.c.l.b16 %v1249
    %v1289 = vunpack.c.l.b16 %v1250
    %v1290 = vpack.c.b16 %v1275, %v1274
    %v1291 = vpack.c.b16 %v1277, %v1276
    %v1292 = vpack.c.b16 %v1279, %v1278
    %v1293 = vpack.c.b16 %v1281, %v1280
    %v1294 = vpack.c.b16 %v1283, %v1282
    %v1295 = vpack.c.b16 %v1285, %v1284
    %v1296 = vpack.c.b16 %v1287, %v1286
    %v1297 = vpack.c.b16 %v1289, %v1288
    %1306 = vmatprep.subr.bf16.mxu0 0
    %1307 = vmatpush1.bf16.msra.mxu0 %v1297
    %1308 = vmatprep.subr.bf16.mxu0 0
    %1309 = vmatpush1.bf16.msra.mxu0 %v1296
    %1310 = vmatprep.subr.bf16.mxu0 0
    %1311 = vmatpush1.bf16.msra.mxu0 %v1295
    %1312 = vmatprep.subr.bf16.mxu0 0
    %1313 = vmatpush1.bf16.msra.mxu0 %v1294
    %1314 = vmatprep.subr.bf16.mxu0 0
    %1315 = vmatpush1.bf16.msra.mxu0 %v1293
    %1316 = vmatprep.subr.bf16.mxu0 0
    %1317 = vmatpush1.bf16.msra.mxu0 %v1292
    %1318 = vmatprep.subr.bf16.mxu0 0
    %1319 = vmatpush1.bf16.msra.mxu0 %v1291
    %1320 = vmatprep.subr.bf16.mxu0 0
    %1321 = vmatpush1.bf16.msra.mxu0 %v1290
    %1322 = vmatprep.subr.bf16.mxu0 0
    %1323 = vmatpush2.bf16.msra.mxu0 0
    %1324 = vmatprep.subr.bf16.mxu0 0
    %1325 = vmatpush2.bf16.msra.mxu0 0
    %1326 = vmatprep.subr.bf16.mxu0 0
    %1327 = vmatpush2.bf16.msra.mxu0 0
    %1328 = vmatprep.subr.bf16.mxu0 0
    %1329 = vmatpush2.bf16.msra.mxu0 0
    %1330 = vmatprep.subr.bf16.mxu0 0
    %1331 = vmatpush2.bf16.msra.mxu0 0
    %1332 = vmatprep.subr.bf16.mxu0 0
    %1333 = vmatpush2.bf16.msra.mxu0 0
    %1334 = vmatprep.subr.bf16.mxu0 0
    %1335 = vmatpush2.bf16.msra.mxu0 0
    %1336 = vmatprep.subr.bf16.mxu0 0
    %1337 = vmatpush2.bf16.msra.mxu0 0
    %1338 = vmatprep.mubr.bf16.mxu0 0
    %1339 = vmatmul.mubr.bf16.gmra.mxu0 %v1234
    %v1340 = vpop.f32.mrf.mxu0
    %v1341 = vadd.f32 %v1256, %v1340
    %v1342 = vpop.f32.mrf.mxu0
    %v1343 = vpop.f32.mrf.mxu0
    %v1344 = vadd.f32 %v1256, %v1343
    %v1345 = vpop.f32.mrf.mxu0
    %1346 = vdwg.mxu0
    %1347 = vst [vmem:[#allocation14] sm:$0xff] %v1341
    %1348 = vst [vmem:[#allocation14 + $0x8] sm:$0xff] %v1344
    // Predicated region
    $region74: #{tpu_custom_call.1} parent=1 // pred_check
      _
    $region75: #{tpu_custom_call.1} parent=1 // pred_check_branch
      %1350 = sbr.rel (0) target = $region77
    $region76: #{tpu_custom_call.1} parent=1 // pred_region
      %s1352 = ssub.s32 256, 256
      %1353 = vsyncadd [#allocation4], %s1352
      %s1354 = sshll.u32 [#allocation14], 4
      %s1355 = int_to_ptr.vmem [resolvable:$true] %s1354
      %1360 = dma.vmem_to_hbm [thread:$0]  %s1355, 256, %s11, [#allocation4], 128, 128, 8
    $region77: #{tpu_custom_call.1} parent=1 // pred_fallthru
      _
    // Predicated region
    $region78: #{tpu_custom_call.1} parent=1 // pred_check
      _
    $region79: #{tpu_custom_call.1} parent=1 // pred_check_branch
      %1362 = sbr.rel (0) target = $region81
    $region80: #{tpu_custom_call.1} parent=1 // pred_region
      %1363 = dma.done [#allocation4], 256
    $region81: #{tpu_custom_call.1} parent=1 // pred_fallthru
      _
    %1364 = vsyncpa [#allocation3], 1
    %1365 = vsyncpa [#allocation6], 1
    %1366 = vsyncpa [#allocation9], 1
    %1367 = vsyncpa [#allocation12], 1
    %1368 = vsyncpa [#allocation4], 1

</llo_original>
